<compile_context>
chip_gen: v6e
topology: v6e:2x2x1
jax: 0.10.0
libtpu: 0.0.40
codegen_flags: <defaults>
</compile_context>

<pallas_src>
from functools import partial

import jax
import jax.numpy as jnp
from jax import lax
from jax.experimental import pallas as pl
from jax.experimental.pallas import tpu as pltpu


def bert_output_kernel(h_ref, res_ref, w_ref, p_ref, o_ref, *, eps):
    """One row tile: dense (bf16 MXU, f32 acc) + bias + residual + LayerNorm."""
    # dense: (tm, d_int) @ (d_int, d_hid), bf16 operands, f32 accumulation.
    acc = jnp.dot(h_ref[...], w_ref[...], preferred_element_type=jnp.float32)

    bias = p_ref[0:1, :]    # (1, d_hid) f32
    gamma = p_ref[1:2, :]
    beta = p_ref[2:3, :]

    # dropout(p) -> identity at inference; bias + residual in f32.
    x = acc + bias + res_ref[...].astype(jnp.float32)

    # LayerNorm over the hidden (lane) axis, f32 throughout.
    mean = jnp.mean(x, axis=-1, keepdims=True)
    xc = x - mean
    var = jnp.mean(xc * xc, axis=-1, keepdims=True)
    y = xc * lax.rsqrt(var + eps) * gamma + beta

    o_ref[...] = y.astype(o_ref.dtype)


def _round_up(x, n):
    return ((x + n - 1) // n) * n


def _vmem_ceiling_bytes():
    """Generation-aware scoped-VMEM ceiling (leave ~25% for Mosaic scratch)."""
    try:
        cap = int(pltpu.get_tpu_info().vmem_capacity_bytes)
    except Exception:
        cap = 64 << 20  # conservative default: v7x per-TensorCore VMEM
    return (cap * 3) // 4


def _tile_vmem_bytes(tm, d_int, d_hid, out_sz):
    """Worst-case VMEM use for one row tile (assumes double-buffered I/O)."""
    return (2 * d_int * d_hid * 2        # weight (bf16; worst case 2 buffers)
            + 2 * 3 * d_hid * 4          # packed bias/gamma/beta (f32)
            + 2 * tm * d_int * 2         # hidden_states tile (bf16, 2 buffers)
            + 2 * tm * d_hid * 2         # residual tile (bf16, 2 buffers)
            + 2 * tm * d_hid * out_sz    # output tile (2 buffers)
            + 4 * tm * d_hid * 4)        # f32 intermediates headroom


def _choose_tm(m, tm_request, d_int, d_hid, out_sz, ceiling):
    """Row tile: multiple of 16 (bf16 sublane packing), capped by the row count
    and by the VMEM ceiling; when there is more than one block of work, prefer
    an even grid so the 'parallel' megacore split keeps both v7x cores busy."""
    tm = min(_round_up(max(int(tm_request), 16), 16), _round_up(m, 16))
    while tm > 64 and _tile_vmem_bytes(tm, d_int, d_hid, out_sz) > ceiling:
        tm = _round_up(tm // 2, 16)
    if m > tm:
        t = tm
        while t > 16 and pl.cdiv(m, t) % 2 != 0:
            t -= 16
        if pl.cdiv(m, t) % 2 == 0:
            tm = t
    return tm


def bert_output_pallas(hidden_states, input_tensor, w, b, gamma, beta,
                       *, eps=1e-12, tm=512, out_dtype=None):
    """hidden_states: (..., d_int); input_tensor: (..., d_hid);
    w: (d_int, d_hid) (pre-transposed vs torch Linear.weight); b/gamma/beta: (d_hid,).

    Activations are streamed as bf16 (hand them in as bf16 to avoid an upstream
    conversion pass; convert the weight to bf16 once at load time). The matmul
    accumulates in f32 and LayerNorm runs in f32."""
    d_int = hidden_states.shape[-1]
    d_hid = input_tensor.shape[-1]
    lead = hidden_states.shape[:-1]
    if out_dtype is None:
        out_dtype = hidden_states.dtype
    out_sz = jnp.dtype(out_dtype).itemsize

    # bf16 activation streams (no-op casts when the caller already holds bf16).
    hs2d = hidden_states.reshape(-1, d_int).astype(jnp.bfloat16)
    res2d = input_tensor.reshape(-1, d_hid).astype(jnp.bfloat16)
    m = hs2d.shape[0]

    w_bf16 = w.astype(jnp.bfloat16)                     # no-op if pre-converted
    params = jnp.stack([b, gamma, beta]).astype(jnp.float32)  # one resident operand

    ceiling = _vmem_ceiling_bytes()
    tm = _choose_tm(m, tm, d_int, d_hid, out_sz, ceiling)
    grid_m = pl.cdiv(m, tm)   # ragged tail handled by Pallas (masked writes)

    vmem_limit = max(
        min(int(_tile_vmem_bytes(tm, d_int, d_hid, out_sz) * 1.5) + (2 << 20),
            ceiling),
        min(16 << 20, ceiling))

    cost = pl.CostEstimate(
        flops=2 * m * d_int * d_hid + 10 * m * d_hid,
        transcendentals=m,  # one rsqrt per row
        bytes_accessed=(m * d_int * 2 + m * d_hid * 2 + d_int * d_hid * 2
                        + 3 * d_hid * 4 + m * d_hid * out_sz),
    )

    def run(single_buffer_resident):
        resident_kw = ({"pipeline_mode": pl.Buffered(1)}
                       if single_buffer_resident else {})
        grid_spec = pltpu.PrefetchScalarGridSpec(
            num_scalar_prefetch=0,
            grid=(grid_m,),
            in_specs=[
                pl.BlockSpec((tm, d_int), lambda i: (i, 0)),      # hidden tile
                pl.BlockSpec((tm, d_hid), lambda i: (i, 0)),      # residual tile
                pl.BlockSpec((d_int, d_hid), lambda i: (0, 0), **resident_kw),
                pl.BlockSpec((3, d_hid), lambda i: (0, 0), **resident_kw),
            ],
            out_specs=pl.BlockSpec((tm, d_hid), lambda i: (i, 0)),
        )
        return pl.pallas_call(
            partial(bert_output_kernel, eps=float(eps)),
            out_shape=jax.ShapeDtypeStruct((m, d_hid), out_dtype),
            grid_spec=grid_spec,
            compiler_params=pltpu.CompilerParams(
                dimension_semantics=("parallel",),
                vmem_limit_bytes=vmem_limit,
            ),
            cost_estimate=cost,
        )(hs2d, res2d, w_bf16, params)

    try:
        out2d = run(True)     # resident operands single-buffered (saves VMEM)
    except Exception:         # fallback if Buffered(1) is rejected by this jax
        out2d = run(False)

    return out2d.reshape(*lead, d_hid)


def init_bert_output_params(key, intermediate_size, hidden_size, dtype=jnp.float32):
    """nn.Linear-style init (uniform +/- 1/sqrt(fan_in)); weight stored as (in, out)."""
    k1, k2 = jax.random.split(key)
    lim = 1.0 / (intermediate_size ** 0.5)
    w = jax.random.uniform(k1, (intermediate_size, hidden_size), dtype, -lim, lim)
    b = jax.random.uniform(k2, (hidden_size,), dtype, -lim, lim)
    gamma = jnp.ones((hidden_size,), dtype)
    beta = jnp.zeros((hidden_size,), dtype)
    return w, b, gamma, beta


if __name__ == "__main__":
    # Small BERT-like shapes: batch=2, seq=64, intermediate=256, hidden=128.
    B, S, D_INT, D_HID = 2, 64, 256, 128
    EPS = 1e-12

    key = jax.random.PRNGKey(0)
    kh, kr, kp = jax.random.split(key, 3)
    # Activations held in bf16 in HBM (the model's activation dtype).
    hidden_states = jax.random.normal(kh, (B, S, D_INT), jnp.float32).astype(jnp.bfloat16)
    input_tensor = jax.random.normal(kr, (B, S, D_HID), jnp.float32).astype(jnp.bfloat16)
    w, bias, gamma, beta = init_bert_output_params(kp, D_INT, D_HID)
    w = w.astype(jnp.bfloat16)   # convert the weight once, at "load" time

    out = bert_output_pallas(hidden_states, input_tensor, w, bias, gamma, beta, eps=EPS)
    out = jax.block_until_ready(out)

    # Reference in plain JAX mirroring the kernel's bf16-operand / f32-accum math.
    hs2d = hidden_states.reshape(-1, D_INT)
    res2d = input_tensor.reshape(-1, D_HID)
    dense = jnp.dot(hs2d, w, preferred_element_type=jnp.float32) + bias
    x = dense + res2d.astype(jnp.float32)
    mean = x.mean(-1, keepdims=True)
    var = ((x - mean) ** 2).mean(-1, keepdims=True)
    ref = ((x - mean) * lax.rsqrt(var + EPS) * gamma + beta).astype(out.dtype)
    ref = ref.reshape(B, S, D_HID)

    assert out.shape == (B, S, D_HID)
    # bf16 output: tolerance documented as intentional (bf16 matmul operands /
    # bf16 output, f32 accumulation and f32 LayerNorm keep the error small).
    err = float(jnp.max(jnp.abs(out.astype(jnp.float32) - ref.astype(jnp.float32))))
    assert err < 2e-2, err

    print("KERNEL_OK")
</pallas_src>

<mosaic_0001>
module attributes {stable_mosaic.version = 11 : i64} {
  func.func @bert_output_kernel(%arg0: i32, %arg1: memref<128x256xbf16, #tpu.memory_space<vmem>>, %arg2: memref<128x128xbf16, #tpu.memory_space<vmem>>, %arg3: memref<256x128xbf16, #tpu.memory_space<vmem>>, %arg4: memref<3x128xf32, #tpu.memory_space<vmem>>, %arg5: memref<128x128xbf16, #tpu.memory_space<vmem>>) attributes {dimension_semantics = [#tpu.dimension_semantics<parallel>], iteration_bounds = array<i64: 1>, scalar_prefetch = 0 : i64, scratch_operands = 0 : i64, tpu.core_type = #tpu.core_type<tc>, window_params = [{transform_indices = @transform_0, window_bounds = array<i64: 128, 256>}, {transform_indices = @transform_1, window_bounds = array<i64: 128, 128>}, {pipeline_mode = #tpu.pipeline_mode<synchronous>, transform_indices = @transform_2, window_bounds = array<i64: 256, 128>}, {pipeline_mode = #tpu.pipeline_mode<synchronous>, transform_indices = @transform_3, window_bounds = array<i64: 3, 128>}, {transform_indices = @transform_4, window_bounds = array<i64: 128, 128>}]} {
    %c0 = arith.constant 0 : index
    %c0_0 = arith.constant 0 : index
    %0 = vector.load %arg1[%c0, %c0_0] : memref<128x256xbf16, #tpu.memory_space<vmem>>, vector<128x256xbf16>
    %c0_1 = arith.constant 0 : index
    %c0_2 = arith.constant 0 : index
    %1 = vector.load %arg3[%c0_1, %c0_2] : memref<256x128xbf16, #tpu.memory_space<vmem>>, vector<256x128xbf16>
    %cst = arith.constant dense<0.000000e+00> : vector<128x128xf32>
    %2 = tpu.matmul %0, %1, %cst {dimension_numbers = #tpu.dot_dimension_numbers<[1], [0], [0], [1], [0, 0, 1, 1], [], []>} : vector<128x256xbf16>, vector<256x128xbf16>, vector<128x128xf32> -> vector<128x128xf32>
    %c0_3 = arith.constant 0 : index
    %c0_4 = arith.constant 0 : index
    %3 = vector.load %arg4[%c0_3, %c0_4] : memref<3x128xf32, #tpu.memory_space<vmem>>, vector<1x128xf32>
    %c1 = arith.constant 1 : index
    %c0_5 = arith.constant 0 : index
    %4 = vector.load %arg4[%c1, %c0_5] : memref<3x128xf32, #tpu.memory_space<vmem>>, vector<1x128xf32>
    %c2 = arith.constant 2 : index
    %c0_6 = arith.constant 0 : index
    %5 = vector.load %arg4[%c2, %c0_6] : memref<3x128xf32, #tpu.memory_space<vmem>>, vector<1x128xf32>
    %6 = vector.broadcast %3 : vector<1x128xf32> to vector<128x128xf32>
    %7 = arith.addf %2, %6 : vector<128x128xf32>
    %c0_7 = arith.constant 0 : index
    %c0_8 = arith.constant 0 : index
    %8 = vector.load %arg2[%c0_7, %c0_8] : memref<128x128xbf16, #tpu.memory_space<vmem>>, vector<128x128xbf16>
    %9 = arith.extf %8 : vector<128x128xbf16> to vector<128x128xf32>
    %10 = arith.addf %7, %9 : vector<128x128xf32>
    %cst_9 = arith.constant dense<0.000000e+00> : vector<128xf32>
    %11 = vector.multi_reduction <add>, %10, %cst_9 [1] : vector<128x128xf32> to vector<128xf32>
    %12 = vector.shape_cast %11 : vector<128xf32> to vector<128x1xf32>
    %cst_10 = arith.constant 1.280000e+02 : f32
    %13 = vector.broadcast %cst_10 : f32 to vector<128x1xf32>
    %14 = arith.divf %12, %13 : vector<128x1xf32>
    %15 = vector.broadcast %14 : vector<128x1xf32> to vector<128x128xf32>
    %16 = arith.subf %10, %15 : vector<128x128xf32>
    %17 = arith.mulf %16, %16 : vector<128x128xf32>
    %cst_11 = arith.constant dense<0.000000e+00> : vector<128xf32>
    %18 = vector.multi_reduction <add>, %17, %cst_11 [1] : vector<128x128xf32> to vector<128xf32>
    %19 = vector.shape_cast %18 : vector<128xf32> to vector<128x1xf32>
    %cst_12 = arith.constant 1.280000e+02 : f32
    %20 = vector.broadcast %cst_12 : f32 to vector<128x1xf32>
    %21 = arith.divf %19, %20 : vector<128x1xf32>
    %cst_13 = arith.constant 9.99999996E-13 : f32
    %22 = vector.broadcast %cst_13 : f32 to vector<128x1xf32>
    %23 = arith.addf %21, %22 : vector<128x1xf32>
    %24 = math.rsqrt %23 : vector<128x1xf32>
    %25 = vector.broadcast %24 : vector<128x1xf32> to vector<128x128xf32>
    %26 = arith.mulf %16, %25 : vector<128x128xf32>
    %27 = vector.broadcast %4 : vector<1x128xf32> to vector<128x128xf32>
    %28 = arith.mulf %26, %27 : vector<128x128xf32>
    %29 = vector.broadcast %5 : vector<1x128xf32> to vector<128x128xf32>
    %30 = arith.addf %28, %29 : vector<128x128xf32>
    %31 = arith.truncf %30 : vector<128x128xf32> to vector<128x128xbf16>
    %c0_14 = arith.constant 0 : index
    %c0_15 = arith.constant 0 : index
    %32 = vector.load %arg5[%c0_14, %c0_15] : memref<128x128xbf16, #tpu.memory_space<vmem>>, vector<128x128xbf16>
    tpu.vector_store %arg5[%c0_14, %c0_15], %31 {strides = array<i32>} : memref<128x128xbf16, #tpu.memory_space<vmem>>, vector<128x128xbf16>,
    return
  }
  func.func @transform_0(%arg0: i32) -> (i32, i32) {
    %c0_i32 = arith.constant 0 : i32
    %c0_i32_0 = arith.constant 0 : i32
    return %arg0, %c0_i32 : i32, i32
  }
  func.func @transform_1(%arg0: i32) -> (i32, i32) {
    %c0_i32 = arith.constant 0 : i32
    %c0_i32_0 = arith.constant 0 : i32
    return %arg0, %c0_i32 : i32, i32
  }
  func.func @transform_2(%arg0: i32) -> (i32, i32) {
    %c0_i32 = arith.constant 0 : i32
    %c0_i32_0 = arith.constant 0 : i32
    %c0_i32_1 = arith.constant 0 : i32
    return %c0_i32, %c0_i32_0 : i32, i32
  }
  func.func @transform_3(%arg0: i32) -> (i32, i32) {
    %c0_i32 = arith.constant 0 : i32
    %c0_i32_0 = arith.constant 0 : i32
    %c0_i32_1 = arith.constant 0 : i32
    return %c0_i32, %c0_i32_0 : i32, i32
  }
  func.func @transform_4(%arg0: i32) -> (i32, i32) {
    %c0_i32 = arith.constant 0 : i32
    %c0_i32_0 = arith.constant 0 : i32
    return %arg0, %c0_i32 : i32, i32
  }
}

module attributes {stable_mosaic.version = 11 : i64} {
  func.func @bert_output_kernel(%arg0: i32, %arg1: memref<128x256xbf16, #tpu.memory_space<vmem>>, %arg2: memref<128x128xbf16, #tpu.memory_space<vmem>>, %arg3: memref<256x128xbf16, #tpu.memory_space<vmem>>, %arg4: memref<3x128xf32, #tpu.memory_space<vmem>>, %arg5: memref<128x128xbf16, #tpu.memory_space<vmem>>) attributes {dimension_semantics = [#tpu.dimension_semantics<parallel>], iteration_bounds = array<i64: 1>, scalar_prefetch = 0 : i64, scratch_operands = 0 : i64, tpu.core_type = #tpu.core_type<tc>, window_params = [{transform_indices = @transform_0, window_bounds = array<i64: 128, 256>}, {transform_indices = @transform_1, window_bounds = array<i64: 128, 128>}, {pipeline_mode = #tpu.pipeline_mode<synchronous>, transform_indices = @transform_2, window_bounds = array<i64: 256, 128>}, {pipeline_mode = #tpu.pipeline_mode<synchronous>, transform_indices = @transform_3, window_bounds = array<i64: 3, 128>}, {transform_indices = @transform_4, window_bounds = array<i64: 128, 128>}]} {
    %c0 = arith.constant 0 : index
    %c0_0 = arith.constant 0 : index
    %0 = vector.load %arg1[%c0, %c0_0] : memref<128x256xbf16, #tpu.memory_space<vmem>>, vector<128x256xbf16>
    %c0_1 = arith.constant 0 : index
    %c0_2 = arith.constant 0 : index
    %1 = vector.load %arg3[%c0_1, %c0_2] : memref<256x128xbf16, #tpu.memory_space<vmem>>, vector<256x128xbf16>
    %cst = arith.constant dense<0.000000e+00> : vector<128x128xf32>
    %2 = tpu.matmul %0, %1, %cst {dimension_numbers = #tpu.dot_dimension_numbers<[1], [0], [0], [1], [0, 0, 1, 1], [], []>} : vector<128x256xbf16>, vector<256x128xbf16>, vector<128x128xf32> -> vector<128x128xf32>
    %c0_3 = arith.constant 0 : index
    %c0_4 = arith.constant 0 : index
    %3 = vector.load %arg4[%c0_3, %c0_4] : memref<3x128xf32, #tpu.memory_space<vmem>>, vector<1x128xf32>
    %c1 = arith.constant 1 : index
    %c0_5 = arith.constant 0 : index
    %4 = vector.load %arg4[%c1, %c0_5] : memref<3x128xf32, #tpu.memory_space<vmem>>, vector<1x128xf32>
    %c2 = arith.constant 2 : index
    %c0_6 = arith.constant 0 : index
    %5 = vector.load %arg4[%c2, %c0_6] : memref<3x128xf32, #tpu.memory_space<vmem>>, vector<1x128xf32>
    %6 = vector.broadcast %3 : vector<1x128xf32> to vector<128x128xf32>
    %7 = arith.addf %2, %6 : vector<128x128xf32>
    %c0_7 = arith.constant 0 : index
    %c0_8 = arith.constant 0 : index
    %8 = vector.load %arg2[%c0_7, %c0_8] : memref<128x128xbf16, #tpu.memory_space<vmem>>, vector<128x128xbf16>
    %9 = arith.extf %8 : vector<128x128xbf16> to vector<128x128xf32>
    %10 = arith.addf %7, %9 : vector<128x128xf32>
    %cst_9 = arith.constant dense<0.000000e+00> : vector<128xf32>
    %11 = vector.multi_reduction <add>, %10, %cst_9 [1] : vector<128x128xf32> to vector<128xf32>
    %12 = vector.shape_cast %11 : vector<128xf32> to vector<128x1xf32>
    %cst_10 = arith.constant 1.280000e+02 : f32
    %13 = vector.broadcast %cst_10 : f32 to vector<128x1xf32>
    %14 = arith.divf %12, %13 : vector<128x1xf32>
    %15 = vector.broadcast %14 : vector<128x1xf32> to vector<128x128xf32>
    %16 = arith.subf %10, %15 : vector<128x128xf32>
    %17 = arith.mulf %16, %16 : vector<128x128xf32>
    %cst_11 = arith.constant dense<0.000000e+00> : vector<128xf32>
    %18 = vector.multi_reduction <add>, %17, %cst_11 [1] : vector<128x128xf32> to vector<128xf32>
    %19 = vector.shape_cast %18 : vector<128xf32> to vector<128x1xf32>
    %cst_12 = arith.constant 1.280000e+02 : f32
    %20 = vector.broadcast %cst_12 : f32 to vector<128x1xf32>
    %21 = arith.divf %19, %20 : vector<128x1xf32>
    %cst_13 = arith.constant 9.99999996E-13 : f32
    %22 = vector.broadcast %cst_13 : f32 to vector<128x1xf32>
    %23 = arith.addf %21, %22 : vector<128x1xf32>
    %24 = math.rsqrt %23 : vector<128x1xf32>
    %25 = vector.broadcast %24 : vector<128x1xf32> to vector<128x128xf32>
    %26 = arith.mulf %16, %25 : vector<128x128xf32>
    %27 = vector.broadcast %4 : vector<1x128xf32> to vector<128x128xf32>
    %28 = arith.mulf %26, %27 : vector<128x128xf32>
    %29 = vector.broadcast %5 : vector<1x128xf32> to vector<128x128xf32>
    %30 = arith.addf %28, %29 : vector<128x128xf32>
    %31 = arith.truncf %30 : vector<128x128xf32> to vector<128x128xbf16>
    %c0_14 = arith.constant 0 : index
    %c0_15 = arith.constant 0 : index
    %32 = vector.load %arg5[%c0_14, %c0_15] : memref<128x128xbf16, #tpu.memory_space<vmem>>, vector<128x128xbf16>
    tpu.vector_store %arg5[%c0_14, %c0_15], %31 {strides = array<i32>} : memref<128x128xbf16, #tpu.memory_space<vmem>>, vector<128x128xbf16>,
    return
  }
  func.func @transform_0(%arg0: i32) -> (i32, i32) {
    %c0_i32 = arith.constant 0 : i32
    %c0_i32_0 = arith.constant 0 : i32
    return %arg0, %c0_i32 : i32, i32
  }
  func.func @transform_1(%arg0: i32) -> (i32, i32) {
    %c0_i32 = arith.constant 0 : i32
    %c0_i32_0 = arith.constant 0 : i32
    return %arg0, %c0_i32 : i32, i32
  }
  func.func @transform_2(%arg0: i32) -> (i32, i32) {
    %c0_i32 = arith.constant 0 : i32
    %c0_i32_0 = arith.constant 0 : i32
    %c0_i32_1 = arith.constant 0 : i32
    return %c0_i32, %c0_i32_0 : i32, i32
  }
  func.func @transform_3(%arg0: i32) -> (i32, i32) {
    %c0_i32 = arith.constant 0 : i32
    %c0_i32_0 = arith.constant 0 : i32
    %c0_i32_1 = arith.constant 0 : i32
    return %c0_i32, %c0_i32_0 : i32, i32
  }
  func.func @transform_4(%arg0: i32) -> (i32, i32) {
    %c0_i32 = arith.constant 0 : i32
    %c0_i32_0 = arith.constant 0 : i32
    return %arg0, %c0_i32 : i32, i32
  }
}

</mosaic_0001>

<llo_original>
// kernel: tpu_custom_call.1
$region0: #{tpu_custom_call.1}
  #allocation0 [shape = 'u32[]', space=smem, size = 0x4, offset = 0x4, fixed_abs, tag = 'smem constant byte address 0x4 - core index']
  #allocation1 [shape = 'u32[144,128]{1,0:T(1,128)}', space=vmem, size = 0x12000, scoped, tag = 'internal scratch']
  %s0 = inlined_call_operand.hbm [shape: bf16[128,256], index: 0, kind: input, shape index: {}]
  %s1 = inlined_call_operand.hbm [shape: bf16[128,128], index: 1, kind: input, shape index: {}]
  %s2 = inlined_call_operand.hbm [shape: bf16[256,128], index: 2, kind: input, shape index: {}]
  %s3 = inlined_call_operand.vmem [shape: f32[3,128], index: 3, kind: input, shape index: {}]
  %s4 = inlined_call_operand.hbm [shape: bf16[128,128], index: 4, kind: output, shape index: {}]
  %s5 = sld [smem:[#allocation0]]
  $region38: #{tpu_custom_call.1} parent=0
    _
  %s7 = ssub.s32 1, %s5
  %s8 = scalar_select 0, %s7, %s5
  $region1: #{tpu_custom_call.1} parent=0
    #allocation2 [shape = 'u8[65536]{0}', space=vmem, size = 0x10000, scoped, tag = 'input window, operand 0, single buffered']
    #allocation3 [shape = 's32[1]{0}', space=sflag, size = 0x4, scoped, tag = 'scoped memory for tpu_custom_call.1']
    #allocation4 [shape = 's32[1]{0}', space=sflag, size = 0x4, scoped, tag = 'scoped memory for tpu_custom_call.1']
    #allocation5 [shape = 'u8[32768]{0}', space=vmem, size = 0x8000, scoped, tag = 'input window, operand 1, single buffered']
    #allocation6 [shape = 's32[1]{0}', space=sflag, size = 0x4, scoped, tag = 'scoped memory for tpu_custom_call.1']
    #allocation7 [shape = 'u8[65536]{0}', space=vmem, size = 0x10000, scoped, tag = 'input window, operand 2, single buffered']
    #allocation8 [shape = 'u8[32768]{0}', space=vmem, size = 0x8000, scoped, tag = 'output window, operand 0, single buffered']
    %9 = vsyncpa [#allocation3], 0
    %10 = vsyncpa [#allocation6], 0
    %11 = vsyncpa [#allocation4], 0
    // Predicated region
    $region2: #{tpu_custom_call.1} parent=1 // pred_check
      _
    $region3: #{tpu_custom_call.1} parent=1 // pred_check_branch
      %13 = sbr.rel (0) target = $region5
    $region4: #{tpu_custom_call.1} parent=1 // pred_region
      %s15 = ssub.s32 2048, 2048
      %16 = vsyncadd [#allocation3], %s15
      %s17 = sshll.u32 [#allocation2], 4
      %s18 = int_to_ptr.vmem [resolvable:$true] %s17
      %23 = dma.hbm_to_vmem [thread:$0]  %s0, 2048, %s18, [#allocation3], 128, 128, 8
    $region5: #{tpu_custom_call.1} parent=1 // pred_fallthru
      _
    // Predicated region
    $region6: #{tpu_custom_call.1} parent=1 // pred_check
      _
    $region7: #{tpu_custom_call.1} parent=1 // pred_check_branch
      %25 = sbr.rel (0) target = $region9
    $region8: #{tpu_custom_call.1} parent=1 // pred_region
      %s27 = ssub.s32 1024, 1024
      %28 = vsyncadd [#allocation6], %s27
      %s29 = sshll.u32 [#allocation5], 4
      %s30 = int_to_ptr.vmem [resolvable:$true] %s29
      %35 = dma.hbm_to_vmem [thread:$0]  %s1, 1024, %s30, [#allocation6], 64, 64, 4
    $region9: #{tpu_custom_call.1} parent=1 // pred_fallthru
      _
    // Predicated region
    $region10: #{tpu_custom_call.1} parent=1 // pred_check
      _
    $region11: #{tpu_custom_call.1} parent=1 // pred_check_branch
      %37 = sbr.rel (0) target = $region13
    $region12: #{tpu_custom_call.1} parent=1 // pred_region
      %s39 = ssub.s32 2048, 2048
      %40 = vsyncadd [#allocation6], %s39
      %s41 = sshll.u32 [#allocation7], 4
      %s42 = int_to_ptr.vmem [resolvable:$true] %s41
      %47 = dma.hbm_to_vmem [thread:$0]  %s2, 2048, %s42, [#allocation6], 64, 64, 4
    $region13: #{tpu_custom_call.1} parent=1 // pred_fallthru
      _
    // Predicated region
    $region14: #{tpu_custom_call.1} parent=1 // pred_check
      _
    $region15: #{tpu_custom_call.1} parent=1 // pred_check_branch
      %49 = sbr.rel (0) target = $region17
    $region16: #{tpu_custom_call.1} parent=1 // pred_region
      _
    $region17: #{tpu_custom_call.1} parent=1 // pred_fallthru
      _
    // Predicated region
    $region18: #{tpu_custom_call.1} parent=1 // pred_check
      _
    $region19: #{tpu_custom_call.1} parent=1 // pred_check_branch
      %51 = sbr.rel (0) target = $region21
    $region20: #{tpu_custom_call.1} parent=1 // pred_region
      %52 = dma.done [#allocation3], 2048
    $region21: #{tpu_custom_call.1} parent=1 // pred_fallthru
      _
    // Predicated region
    $region22: #{tpu_custom_call.1} parent=1 // pred_check
      _
    $region23: #{tpu_custom_call.1} parent=1 // pred_check_branch
      %54 = sbr.rel (0) target = $region25
    $region24: #{tpu_custom_call.1} parent=1 // pred_region
      %55 = dma.done [#allocation6], 1024
    $region25: #{tpu_custom_call.1} parent=1 // pred_fallthru
      _
    // Predicated region
    $region26: #{tpu_custom_call.1} parent=1 // pred_check
      _
    $region27: #{tpu_custom_call.1} parent=1 // pred_check_branch
      %57 = sbr.rel (0) target = $region29
    $region28: #{tpu_custom_call.1} parent=1 // pred_region
      %58 = dma.done [#allocation6], 2048
    $region29: #{tpu_custom_call.1} parent=1 // pred_fallthru
      _
    %v60 = vld [vmem:[#allocation2] sm:$0xff]
    %v61 = vld [vmem:[#allocation2 + $0x8] sm:$0xff]
    %v62 = vld [vmem:[#allocation2 + $0x10] sm:$0xff]
    %v63 = vld [vmem:[#allocation2 + $0x18] sm:$0xff]
    %v64 = vld [vmem:[#allocation2 + $0x20] sm:$0xff]
    %v65 = vld [vmem:[#allocation2 + $0x28] sm:$0xff]
    %v66 = vld [vmem:[#allocation2 + $0x30] sm:$0xff]
    %v67 = vld [vmem:[#allocation2 + $0x38] sm:$0xff]
    %v68 = vld [vmem:[#allocation2 + $0x40] sm:$0xff]
    %v69 = vld [vmem:[#allocation2 + $0x48] sm:$0xff]
    %v70 = vld [vmem:[#allocation2 + $0x50] sm:$0xff]
    %v71 = vld [vmem:[#allocation2 + $0x58] sm:$0xff]
    %v72 = vld [vmem:[#allocation2 + $0x60] sm:$0xff]
    %v73 = vld [vmem:[#allocation2 + $0x68] sm:$0xff]
    %v74 = vld [vmem:[#allocation2 + $0x70] sm:$0xff]
    %v75 = vld [vmem:[#allocation2 + $0x78] sm:$0xff]
    %v76 = vld [vmem:[#allocation7] sm:$0xf]
    %v77 = vld [vmem:[#allocation7 + $0x4] sm:$0xf]
    %v78 = vld [vmem:[#allocation7 + $0x8] sm:$0xf]
    %v79 = vld [vmem:[#allocation7 + $0xc] sm:$0xf]
    %v80 = vld [vmem:[#allocation7 + $0x10] sm:$0xf]
    %v81 = vld [vmem:[#allocation7 + $0x14] sm:$0xf]
    %v82 = vld [vmem:[#allocation7 + $0x18] sm:$0xf]
    %v83 = vld [vmem:[#allocation7 + $0x1c] sm:$0xf]
    %v84 = vld [vmem:[#allocation7 + $0x20] sm:$0xf]
    %v85 = vld [vmem:[#allocation7 + $0x24] sm:$0xf]
    %v86 = vld [vmem:[#allocation7 + $0x28] sm:$0xf]
    %v87 = vld [vmem:[#allocation7 + $0x2c] sm:$0xf]
    %v88 = vld [vmem:[#allocation7 + $0x30] sm:$0xf]
    %v89 = vld [vmem:[#allocation7 + $0x34] sm:$0xf]
    %v90 = vld [vmem:[#allocation7 + $0x38] sm:$0xf]
    %v91 = vld [vmem:[#allocation7 + $0x3c] sm:$0xf]
    %v92 = vld [vmem:[#allocation7 + $0x40] sm:$0xf]
    %v93 = vld [vmem:[#allocation7 + $0x44] sm:$0xf]
    %v94 = vld [vmem:[#allocation7 + $0x48] sm:$0xf]
    %v95 = vld [vmem:[#allocation7 + $0x4c] sm:$0xf]
    %v96 = vld [vmem:[#allocation7 + $0x50] sm:$0xf]
    %v97 = vld [vmem:[#allocation7 + $0x54] sm:$0xf]
    %v98 = vld [vmem:[#allocation7 + $0x58] sm:$0xf]
    %v99 = vld [vmem:[#allocation7 + $0x5c] sm:$0xf]
    %v100 = vld [vmem:[#allocation7 + $0x60] sm:$0xf]
    %v101 = vld [vmem:[#allocation7 + $0x64] sm:$0xf]
    %v102 = vld [vmem:[#allocation7 + $0x68] sm:$0xf]
    %v103 = vld [vmem:[#allocation7 + $0x6c] sm:$0xf]
    %v104 = vld [vmem:[#allocation7 + $0x70] sm:$0xf]
    %v105 = vld [vmem:[#allocation7 + $0x74] sm:$0xf]
    %v106 = vld [vmem:[#allocation7 + $0x78] sm:$0xf]
    %v107 = vld [vmem:[#allocation7 + $0x7c] sm:$0xf]
    %v108 = vld [vmem:[%s3] sm:$0x1]
    %v109 = vld [vmem:[%s3 + $0x1] sm:$0x1]
    %v110 = vld [vmem:[%s3 + $0x2] sm:$0x1]
    %v111 = vlaneseq
    %v112 = vshrl.u32 %v111, 7
    %v113 = vsub.s32 0, %v112
    %v114 = vrot.slane %v108, %v113
    %v131 = vunpack.c.l.b16 %v60
    %v132 = vunpack.c.h.b16 %v60
    %v133 = vunpack.c.l.b16 %v61
    %v134 = vunpack.c.h.b16 %v61
    %v135 = vunpack.c.l.b16 %v62
    %v136 = vunpack.c.h.b16 %v62
    %v137 = vunpack.c.l.b16 %v63
    %v138 = vunpack.c.h.b16 %v63
    %v139 = vunpack.c.l.b16 %v64
    %v140 = vunpack.c.h.b16 %v64
    %v141 = vunpack.c.l.b16 %v65
    %v142 = vunpack.c.h.b16 %v65
    %v143 = vunpack.c.l.b16 %v66
    %v144 = vunpack.c.h.b16 %v66
    %v145 = vunpack.c.l.b16 %v67
    %v146 = vunpack.c.h.b16 %v67
    %v147 = vunpack.c.l.b16 %v68
    %v148 = vunpack.c.h.b16 %v68
    %v149 = vunpack.c.l.b16 %v69
    %v150 = vunpack.c.h.b16 %v69
    %v151 = vunpack.c.l.b16 %v70
    %v152 = vunpack.c.h.b16 %v70
    %v153 = vunpack.c.l.b16 %v71
    %v154 = vunpack.c.h.b16 %v71
    %v155 = vunpack.c.l.b16 %v72
    %v156 = vunpack.c.h.b16 %v72
    %v157 = vunpack.c.l.b16 %v73
    %v158 = vunpack.c.h.b16 %v73
    %v159 = vunpack.c.l.b16 %v74
    %v160 = vunpack.c.h.b16 %v74
    %v161 = vunpack.c.l.b16 %v75
    %v162 = vunpack.c.h.b16 %v75
    %v163 = vpack.c.b16 %v133, %v131
    %v164 = vpack.c.b16 %v134, %v132
    %v165 = vpack.c.b16 %v137, %v135
    %v166 = vpack.c.b16 %v138, %v136
    %v167 = vpack.c.b16 %v141, %v139
    %v168 = vpack.c.b16 %v142, %v140
    %v169 = vpack.c.b16 %v145, %v143
    %v170 = vpack.c.b16 %v146, %v144
    %v171 = vpack.c.b16 %v149, %v147
    %v172 = vpack.c.b16 %v150, %v148
    %v173 = vpack.c.b16 %v153, %v151
    %v174 = vpack.c.b16 %v154, %v152
    %v175 = vpack.c.b16 %v157, %v155
    %v176 = vpack.c.b16 %v158, %v156
    %v177 = vpack.c.b16 %v161, %v159
    %v178 = vpack.c.b16 %v162, %v160
    %v227 = vunpack.c.l.b16 %v76
    %v228 = vunpack.c.l.b16 %v77
    %v229 = vunpack.c.l.b16 %v78
    %v230 = vunpack.c.l.b16 %v79
    %v231 = vunpack.c.l.b16 %v80
    %v232 = vunpack.c.l.b16 %v81
    %v233 = vunpack.c.l.b16 %v82
    %v234 = vunpack.c.l.b16 %v83
    %v235 = vunpack.c.l.b16 %v84
    %v236 = vunpack.c.l.b16 %v85
    %v237 = vunpack.c.l.b16 %v86
    %v238 = vunpack.c.l.b16 %v87
    %v239 = vunpack.c.l.b16 %v88
    %v240 = vunpack.c.l.b16 %v89
    %v241 = vunpack.c.l.b16 %v90
    %v242 = vunpack.c.l.b16 %v91
    %v243 = vunpack.c.l.b16 %v92
    %v244 = vunpack.c.l.b16 %v93
    %v245 = vunpack.c.l.b16 %v94
    %v246 = vunpack.c.l.b16 %v95
    %v247 = vunpack.c.l.b16 %v96
    %v248 = vunpack.c.l.b16 %v97
    %v249 = vunpack.c.l.b16 %v98
    %v250 = vunpack.c.l.b16 %v99
    %v251 = vunpack.c.l.b16 %v100
    %v252 = vunpack.c.l.b16 %v101
    %v253 = vunpack.c.l.b16 %v102
    %v254 = vunpack.c.l.b16 %v103
    %v255 = vunpack.c.l.b16 %v104
    %v256 = vunpack.c.l.b16 %v105
    %v257 = vunpack.c.l.b16 %v106
    %v258 = vunpack.c.l.b16 %v107
    %v259 = vpack.c.b16 %v228, %v227
    %v260 = vpack.c.b16 %v230, %v229
    %v261 = vpack.c.b16 %v232, %v231
    %v262 = vpack.c.b16 %v234, %v233
    %v263 = vpack.c.b16 %v236, %v235
    %v264 = vpack.c.b16 %v238, %v237
    %v265 = vpack.c.b16 %v240, %v239
    %v266 = vpack.c.b16 %v242, %v241
    %v267 = vpack.c.b16 %v244, %v243
    %v268 = vpack.c.b16 %v246, %v245
    %v269 = vpack.c.b16 %v248, %v247
    %v270 = vpack.c.b16 %v250, %v249
    %v271 = vpack.c.b16 %v252, %v251
    %v272 = vpack.c.b16 %v254, %v253
    %v273 = vpack.c.b16 %v256, %v255
    %v274 = vpack.c.b16 %v258, %v257
    %291 = vmatprep.subr.bf16.mxu0 0
    %292 = vmatpush1.bf16.msra.mxu0 %v266
    %293 = vmatprep.subr.bf16.mxu0 0
    %294 = vmatpush1.bf16.msra.mxu0 %v265
    %295 = vmatprep.subr.bf16.mxu0 0
    %296 = vmatpush1.bf16.msra.mxu0 %v264
    %297 = vmatprep.subr.bf16.mxu0 0
    %298 = vmatpush1.bf16.msra.mxu0 %v263
    %299 = vmatprep.subr.bf16.mxu0 0
    %300 = vmatpush1.bf16.msra.mxu0 %v262
    %301 = vmatprep.subr.bf16.mxu0 0
    %302 = vmatpush1.bf16.msra.mxu0 %v261
    %303 = vmatprep.subr.bf16.mxu0 0
    %304 = vmatpush1.bf16.msra.mxu0 %v260
    %305 = vmatprep.subr.bf16.mxu0 0
    %306 = vmatpush1.bf16.msra.mxu0 %v259
    %307 = vmatprep.subr.bf16.mxu0 0
    %308 = vmatpush2.bf16.msra.mxu0 %v274
    %309 = vmatprep.subr.bf16.mxu0 0
    %310 = vmatpush2.bf16.msra.mxu0 %v273
    %311 = vmatprep.subr.bf16.mxu0 0
    %312 = vmatpush2.bf16.msra.mxu0 %v272
    %313 = vmatprep.subr.bf16.mxu0 0
    %314 = vmatpush2.bf16.msra.mxu0 %v271
    %315 = vmatprep.subr.bf16.mxu0 0
    %316 = vmatpush2.bf16.msra.mxu0 %v270
    %317 = vmatprep.subr.bf16.mxu0 0
    %318 = vmatpush2.bf16.msra.mxu0 %v269
    %319 = vmatprep.subr.bf16.mxu0 0
    %320 = vmatpush2.bf16.msra.mxu0 %v268
    %321 = vmatprep.subr.bf16.mxu0 0
    %322 = vmatpush2.bf16.msra.mxu0 %v267
    %323 = vmatprep.mubr.bf16.mxu0 %v164
    %324 = vmatmul.mubr.bf16.gmra.mxu0 %v163
    %v325 = vpop.f32.mrf.mxu0
    %v326 = vadd.f32 %v114, %v325
    %v327 = vpop.f32.mrf.mxu0
    %v328 = vpop.f32.mrf.mxu0
    %v329 = vadd.f32 %v114, %v328
    %v330 = vpop.f32.mrf.mxu0
    %331 = vmatprep.mubr.bf16.mxu0 %v166
    %332 = vmatmul.mubr.bf16.gmra.mxu0 %v165
    %v333 = vpop.f32.mrf.mxu0
    %v334 = vadd.f32 %v114, %v333
    %v335 = vpop.f32.mrf.mxu0
    %v336 = vpop.f32.mrf.mxu0
    %v337 = vadd.f32 %v114, %v336
    %v338 = vpop.f32.mrf.mxu0
    %339 = vmatprep.mubr.bf16.mxu0 %v168
    %340 = vmatmul.mubr.bf16.gmra.mxu0 %v167
    %v341 = vpop.f32.mrf.mxu0
    %v342 = vadd.f32 %v114, %v341
    %v343 = vpop.f32.mrf.mxu0
    %v344 = vpop.f32.mrf.mxu0
    %v345 = vadd.f32 %v114, %v344
    %v346 = vpop.f32.mrf.mxu0
    %347 = vmatprep.mubr.bf16.mxu0 %v170
    %348 = vmatmul.mubr.bf16.gmra.mxu0 %v169
    %v349 = vpop.f32.mrf.mxu0
    %v350 = vadd.f32 %v114, %v349
    %v351 = vpop.f32.mrf.mxu0
    %v352 = vpop.f32.mrf.mxu0
    %v353 = vadd.f32 %v114, %v352
    %v354 = vpop.f32.mrf.mxu0
    %355 = vmatprep.mubr.bf16.mxu0 %v172
    %356 = vmatmul.mubr.bf16.gmra.mxu0 %v171
    %v357 = vpop.f32.mrf.mxu0
    %v358 = vadd.f32 %v114, %v357
    %v359 = vpop.f32.mrf.mxu0
    %v360 = vpop.f32.mrf.mxu0
    %v361 = vadd.f32 %v114, %v360
    %v362 = vpop.f32.mrf.mxu0
    %363 = vmatprep.mubr.bf16.mxu0 %v174
    %364 = vmatmul.mubr.bf16.gmra.mxu0 %v173
    %v365 = vpop.f32.mrf.mxu0
    %v366 = vadd.f32 %v114, %v365
    %v367 = vpop.f32.mrf.mxu0
    %v368 = vpop.f32.mrf.mxu0
    %v369 = vadd.f32 %v114, %v368
    %v370 = vpop.f32.mrf.mxu0
    %371 = vmatprep.mubr.bf16.mxu0 %v176
    %372 = vmatmul.mubr.bf16.gmra.mxu0 %v175
    %v373 = vpop.f32.mrf.mxu0
    %v374 = vadd.f32 %v114, %v373
    %v375 = vpop.f32.mrf.mxu0
    %v376 = vpop.f32.mrf.mxu0
    %v377 = vadd.f32 %v114, %v376
    %v378 = vpop.f32.mrf.mxu0
    %379 = vmatprep.mubr.bf16.mxu0 %v178
    %380 = vmatmul.mubr.bf16.gmra.mxu0 %v177
    %v381 = vpop.f32.mrf.mxu0
    %v382 = vadd.f32 %v114, %v381
    %v383 = vpop.f32.mrf.mxu0
    %v384 = vpop.f32.mrf.mxu0
    %v385 = vadd.f32 %v114, %v384
    %v386 = vpop.f32.mrf.mxu0
    %387 = vdwg.mxu0
    %v388 = vld [vmem:[#allocation5] sm:$0xf]
    %v389 = vld [vmem:[#allocation5 + $0x4] sm:$0xf]
    %v390 = vld [vmem:[#allocation5 + $0x8] sm:$0xf]
    %v391 = vld [vmem:[#allocation5 + $0xc] sm:$0xf]
    %v392 = vld [vmem:[#allocation5 + $0x10] sm:$0xf]
    %v393 = vld [vmem:[#allocation5 + $0x14] sm:$0xf]
    %v394 = vld [vmem:[#allocation5 + $0x18] sm:$0xf]
    %v395 = vld [vmem:[#allocation5 + $0x1c] sm:$0xf]
    %v396 = vld [vmem:[#allocation5 + $0x20] sm:$0xf]
    %v397 = vld [vmem:[#allocation5 + $0x24] sm:$0xf]
    %v398 = vld [vmem:[#allocation5 + $0x28] sm:$0xf]
    %v399 = vld [vmem:[#allocation5 + $0x2c] sm:$0xf]
    %v400 = vld [vmem:[#allocation5 + $0x30] sm:$0xf]
    %v401 = vld [vmem:[#allocation5 + $0x34] sm:$0xf]
    %v402 = vld [vmem:[#allocation5 + $0x38] sm:$0xf]
    %v403 = vld [vmem:[#allocation5 + $0x3c] sm:$0xf]
    %v404 = vunpack.c.l.bf16 %v388
    %v405 = vunpack.c.l.bf16 %v389
    %v406 = vunpack.c.l.bf16 %v390
    %v407 = vunpack.c.l.bf16 %v391
    %v408 = vunpack.c.l.bf16 %v392
    %v409 = vunpack.c.l.bf16 %v393
    %v410 = vunpack.c.l.bf16 %v394
    %v411 = vunpack.c.l.bf16 %v395
    %v412 = vunpack.c.l.bf16 %v396
    %v413 = vunpack.c.l.bf16 %v397
    %v414 = vunpack.c.l.bf16 %v398
    %v415 = vunpack.c.l.bf16 %v399
    %v416 = vunpack.c.l.bf16 %v400
    %v417 = vunpack.c.l.bf16 %v401
    %v418 = vunpack.c.l.bf16 %v402
    %v419 = vunpack.c.l.bf16 %v403
    %v420 = vadd.f32 %v326, %v404
    %v421 = vadd.f32 %v329, %v405
    %v422 = vadd.f32 %v334, %v406
    %v423 = vadd.f32 %v337, %v407
    %v424 = vadd.f32 %v342, %v408
    %v425 = vadd.f32 %v345, %v409
    %v426 = vadd.f32 %v350, %v410
    %v427 = vadd.f32 %v353, %v411
    %v428 = vadd.f32 %v358, %v412
    %v429 = vadd.f32 %v361, %v413
    %v430 = vadd.f32 %v366, %v414
    %v431 = vadd.f32 %v369, %v415
    %v432 = vadd.f32 %v374, %v416
    %v433 = vadd.f32 %v377, %v417
    %v434 = vadd.f32 %v382, %v418
    %v435 = vadd.f32 %v385, %v419
    %436 = vadd.xlane.f32.xlu0 %v420
    %v437 = vpop.xlane.xlu0 %436
    %438 = vadd.xlane.f32.xlu0 %v421
    %v439 = vpop.xlane.xlu0 %438
    %440 = vadd.xlane.f32.xlu0 %v422
    %v441 = vpop.xlane.xlu0 %440
    %442 = vadd.xlane.f32.xlu0 %v423
    %v443 = vpop.xlane.xlu0 %442
    %444 = vadd.xlane.f32.xlu0 %v424
    %v445 = vpop.xlane.xlu0 %444
    %446 = vadd.xlane.f32.xlu0 %v425
    %v447 = vpop.xlane.xlu0 %446
    %448 = vadd.xlane.f32.xlu0 %v426
    %v449 = vpop.xlane.xlu0 %448
    %450 = vadd.xlane.f32.xlu0 %v427
    %v451 = vpop.xlane.xlu0 %450
    %452 = vadd.xlane.f32.xlu0 %v428
    %v453 = vpop.xlane.xlu0 %452
    %454 = vadd.xlane.f32.xlu0 %v429
    %v455 = vpop.xlane.xlu0 %454
    %456 = vadd.xlane.f32.xlu0 %v430
    %v457 = vpop.xlane.xlu0 %456
    %458 = vadd.xlane.f32.xlu0 %v431
    %v459 = vpop.xlane.xlu0 %458
    %460 = vadd.xlane.f32.xlu0 %v432
    %v461 = vpop.xlane.xlu0 %460
    %462 = vadd.xlane.f32.xlu0 %v433
    %v463 = vpop.xlane.xlu0 %462
    %464 = vadd.xlane.f32.xlu0 %v434
    %v465 = vpop.xlane.xlu0 %464
    %466 = vadd.xlane.f32.xlu0 %v435
    %v467 = vpop.xlane.xlu0 %466
    %v468 = vrcp.pop 128.0
    %v469 = vmul.f32 %v437, %v468
    %v470 = vmul.f32 %v439, %v468
    %v471 = vmul.f32 %v441, %v468
    %v472 = vmul.f32 %v443, %v468
    %v473 = vmul.f32 %v445, %v468
    %v474 = vmul.f32 %v447, %v468
    %v475 = vmul.f32 %v449, %v468
    %v476 = vmul.f32 %v451, %v468
    %v477 = vmul.f32 %v453, %v468
    %v478 = vmul.f32 %v455, %v468
    %v479 = vmul.f32 %v457, %v468
    %v480 = vmul.f32 %v459, %v468
    %v481 = vmul.f32 %v461, %v468
    %v482 = vmul.f32 %v463, %v468
    %v483 = vmul.f32 %v465, %v468
    %v484 = vmul.f32 %v467, %v468
    %v485 = vsub.f32 %v420, %v469
    %v486 = vsub.f32 %v421, %v470
    %v487 = vsub.f32 %v422, %v471
    %v488 = vsub.f32 %v423, %v472
    %v489 = vsub.f32 %v424, %v473
    %v490 = vsub.f32 %v425, %v474
    %v491 = vsub.f32 %v426, %v475
    %v492 = vsub.f32 %v427, %v476
    %v493 = vsub.f32 %v428, %v477
    %v494 = vsub.f32 %v429, %v478
    %v495 = vsub.f32 %v430, %v479
    %v496 = vsub.f32 %v431, %v480
    %v497 = vsub.f32 %v432, %v481
    %v498 = vsub.f32 %v433, %v482
    %v499 = vsub.f32 %v434, %v483
    %v500 = vsub.f32 %v435, %v484
    %v501 = vmul.f32 %v485, %v485
    %v502 = vmul.f32 %v486, %v486
    %v503 = vmul.f32 %v487, %v487
    %v504 = vmul.f32 %v488, %v488
    %v505 = vmul.f32 %v489, %v489
    %v506 = vmul.f32 %v490, %v490
    %v507 = vmul.f32 %v491, %v491
    %v508 = vmul.f32 %v492, %v492
    %v509 = vmul.f32 %v493, %v493
    %v510 = vmul.f32 %v494, %v494
    %v511 = vmul.f32 %v495, %v495
    %v512 = vmul.f32 %v496, %v496
    %v513 = vmul.f32 %v497, %v497
    %v514 = vmul.f32 %v498, %v498
    %v515 = vmul.f32 %v499, %v499
    %v516 = vmul.f32 %v500, %v500
    %517 = vadd.xlane.f32.xlu0 %v501
    %v518 = vpop.xlane.xlu0 %517
    %519 = vadd.xlane.f32.xlu0 %v502
    %v520 = vpop.xlane.xlu0 %519
    %521 = vadd.xlane.f32.xlu0 %v503
    %v522 = vpop.xlane.xlu0 %521
    %523 = vadd.xlane.f32.xlu0 %v504
    %v524 = vpop.xlane.xlu0 %523
    %525 = vadd.xlane.f32.xlu0 %v505
    %v526 = vpop.xlane.xlu0 %525
    %527 = vadd.xlane.f32.xlu0 %v506
    %v528 = vpop.xlane.xlu0 %527
    %529 = vadd.xlane.f32.xlu0 %v507
    %v530 = vpop.xlane.xlu0 %529
    %531 = vadd.xlane.f32.xlu0 %v508
    %v532 = vpop.xlane.xlu0 %531
    %533 = vadd.xlane.f32.xlu0 %v509
    %v534 = vpop.xlane.xlu0 %533
    %535 = vadd.xlane.f32.xlu0 %v510
    %v536 = vpop.xlane.xlu0 %535
    %537 = vadd.xlane.f32.xlu0 %v511
    %v538 = vpop.xlane.xlu0 %537
    %539 = vadd.xlane.f32.xlu0 %v512
    %v540 = vpop.xlane.xlu0 %539
    %541 = vadd.xlane.f32.xlu0 %v513
    %v542 = vpop.xlane.xlu0 %541
    %543 = vadd.xlane.f32.xlu0 %v514
    %v544 = vpop.xlane.xlu0 %543
    %545 = vadd.xlane.f32.xlu0 %v515
    %v546 = vpop.xlane.xlu0 %545
    %547 = vadd.xlane.f32.xlu0 %v516
    %v548 = vpop.xlane.xlu0 %547
    %v549 = vmul.f32 %v518, %v468
    %v550 = vmul.f32 %v520, %v468
    %v551 = vmul.f32 %v522, %v468
    %v552 = vmul.f32 %v524, %v468
    %v553 = vmul.f32 %v526, %v468
    %v554 = vmul.f32 %v528, %v468
    %v555 = vmul.f32 %v530, %v468
    %v556 = vmul.f32 %v532, %v468
    %v557 = vmul.f32 %v534, %v468
    %v558 = vmul.f32 %v536, %v468
    %v559 = vmul.f32 %v538, %v468
    %v560 = vmul.f32 %v540, %v468
    %v561 = vmul.f32 %v542, %v468
    %v562 = vmul.f32 %v544, %v468
    %v563 = vmul.f32 %v546, %v468
    %v564 = vmul.f32 %v548, %v468
    %v565 = vadd.f32 %v549, 1e-12
    %v566 = vadd.f32 %v550, 1e-12
    %v567 = vadd.f32 %v551, 1e-12
    %v568 = vadd.f32 %v552, 1e-12
    %v569 = vadd.f32 %v553, 1e-12
    %v570 = vadd.f32 %v554, 1e-12
    %v571 = vadd.f32 %v555, 1e-12
    %v572 = vadd.f32 %v556, 1e-12
    %v573 = vadd.f32 %v557, 1e-12
    %v574 = vadd.f32 %v558, 1e-12
    %v575 = vadd.f32 %v559, 1e-12
    %v576 = vadd.f32 %v560, 1e-12
    %v577 = vadd.f32 %v561, 1e-12
    %v578 = vadd.f32 %v562, 1e-12
    %v579 = vadd.f32 %v563, 1e-12
    %v580 = vadd.f32 %v564, 1e-12
    %v581 = vrsqrt.pop %v565
    %v582 = vrsqrt.pop %v566
    %v583 = vrsqrt.pop %v567
    %v584 = vrsqrt.pop %v568
    %v585 = vrsqrt.pop %v569
    %v586 = vrsqrt.pop %v570
    %v587 = vrsqrt.pop %v571
    %v588 = vrsqrt.pop %v572
    %v589 = vrsqrt.pop %v573
    %v590 = vrsqrt.pop %v574
    %v591 = vrsqrt.pop %v575
    %v592 = vrsqrt.pop %v576
    %v593 = vrsqrt.pop %v577
    %v594 = vrsqrt.pop %v578
    %v595 = vrsqrt.pop %v579
    %v596 = vrsqrt.pop %v580
    %v597 = vmul.f32 %v485, %v581
    %v598 = vmul.f32 %v486, %v582
    %v599 = vmul.f32 %v487, %v583
    %v600 = vmul.f32 %v488, %v584
    %v601 = vmul.f32 %v489, %v585
    %v602 = vmul.f32 %v490, %v586
    %v603 = vmul.f32 %v491, %v587
    %v604 = vmul.f32 %v492, %v588
    %v605 = vmul.f32 %v493, %v589
    %v606 = vmul.f32 %v494, %v590
    %v607 = vmul.f32 %v495, %v591
    %v608 = vmul.f32 %v496, %v592
    %v609 = vmul.f32 %v497, %v593
    %v610 = vmul.f32 %v498, %v594
    %v611 = vmul.f32 %v499, %v595
    %v612 = vmul.f32 %v500, %v596
    %v613 = vlaneseq
    %v614 = vshrl.u32 %v613, 7
    %v615 = vsub.s32 0, %v614
    %v616 = vrot.slane %v109, %v615
    %v617 = vmul.f32 %v597, %v616
    %v618 = vmul.f32 %v598, %v616
    %v619 = vmul.f32 %v599, %v616
    %v620 = vmul.f32 %v600, %v616
    %v621 = vmul.f32 %v601, %v616
    %v622 = vmul.f32 %v602, %v616
    %v623 = vmul.f32 %v603, %v616
    %v624 = vmul.f32 %v604, %v616
    %v625 = vmul.f32 %v605, %v616
    %v626 = vmul.f32 %v606, %v616
    %v627 = vmul.f32 %v607, %v616
    %v628 = vmul.f32 %v608, %v616
    %v629 = vmul.f32 %v609, %v616
    %v630 = vmul.f32 %v610, %v616
    %v631 = vmul.f32 %v611, %v616
    %v632 = vmul.f32 %v612, %v616
    %v633 = vlaneseq
    %v634 = vshrl.u32 %v633, 7
    %v635 = vsub.s32 0, %v634
    %v636 = vrot.slane %v110, %v635
    %v637 = vadd.f32 %v617, %v636
    %v638 = vadd.f32 %v618, %v636
    %v639 = vadd.f32 %v619, %v636
    %v640 = vadd.f32 %v620, %v636
    %v641 = vadd.f32 %v621, %v636
    %v642 = vadd.f32 %v622, %v636
    %v643 = vadd.f32 %v623, %v636
    %v644 = vadd.f32 %v624, %v636
    %v645 = vadd.f32 %v625, %v636
    %v646 = vadd.f32 %v626, %v636
    %v647 = vadd.f32 %v627, %v636
    %v648 = vadd.f32 %v628, %v636
    %v649 = vadd.f32 %v629, %v636
    %v650 = vadd.f32 %v630, %v636
    %v651 = vadd.f32 %v631, %v636
    %v652 = vadd.f32 %v632, %v636
    %v653 = vpack.c.bf16 %v638, %v637
    %v654 = vpack.c.bf16 %v640, %v639
    %v655 = vpack.c.bf16 %v642, %v641
    %v656 = vpack.c.bf16 %v644, %v643
    %v657 = vpack.c.bf16 %v646, %v645
    %v658 = vpack.c.bf16 %v648, %v647
    %v659 = vpack.c.bf16 %v650, %v649
    %v660 = vpack.c.bf16 %v652, %v651
    %v669 = vunpack.c.l.b16 %v653
    %v670 = vunpack.c.h.b16 %v653
    %v671 = vunpack.c.l.b16 %v654
    %v672 = vunpack.c.h.b16 %v654
    %v673 = vunpack.c.l.b16 %v655
    %v674 = vunpack.c.h.b16 %v655
    %v675 = vunpack.c.l.b16 %v656
    %v676 = vunpack.c.h.b16 %v656
    %v677 = vunpack.c.l.b16 %v657
    %v678 = vunpack.c.h.b16 %v657
    %v679 = vunpack.c.l.b16 %v658
    %v680 = vunpack.c.h.b16 %v658
    %v681 = vunpack.c.l.b16 %v659
    %v682 = vunpack.c.h.b16 %v659
    %v683 = vunpack.c.l.b16 %v660
    %v684 = vunpack.c.h.b16 %v660
    %v685 = vpack.c.b16 %v669, %v669
    %v686 = vpack.c.b16 %v670, %v670
    %v687 = vpack.c.b16 %v671, %v671
    %v688 = vpack.c.b16 %v672, %v672
    %v689 = vpack.c.b16 %v673, %v673
    %v690 = vpack.c.b16 %v674, %v674
    %v691 = vpack.c.b16 %v675, %v675
    %v692 = vpack.c.b16 %v676, %v676
    %v693 = vpack.c.b16 %v677, %v677
    %v694 = vpack.c.b16 %v678, %v678
    %v695 = vpack.c.b16 %v679, %v679
    %v696 = vpack.c.b16 %v680, %v680
    %v697 = vpack.c.b16 %v681, %v681
    %v698 = vpack.c.b16 %v682, %v682
    %v699 = vpack.c.b16 %v683, %v683
    %v700 = vpack.c.b16 %v684, %v684
    %717 = vst [vmem:[#allocation8] sm:$0xf] %v685
    %718 = vst [vmem:[#allocation8 + $0x4] sm:$0xf] %v686
    %719 = vst [vmem:[#allocation8 + $0x8] sm:$0xf] %v687
    %720 = vst [vmem:[#allocation8 + $0xc] sm:$0xf] %v688
    %721 = vst [vmem:[#allocation8 + $0x10] sm:$0xf] %v689
    %722 = vst [vmem:[#allocation8 + $0x14] sm:$0xf] %v690
    %723 = vst [vmem:[#allocation8 + $0x18] sm:$0xf] %v691
    %724 = vst [vmem:[#allocation8 + $0x1c] sm:$0xf] %v692
    %725 = vst [vmem:[#allocation8 + $0x20] sm:$0xf] %v693
    %726 = vst [vmem:[#allocation8 + $0x24] sm:$0xf] %v694
    %727 = vst [vmem:[#allocation8 + $0x28] sm:$0xf] %v695
    %728 = vst [vmem:[#allocation8 + $0x2c] sm:$0xf] %v696
    %729 = vst [vmem:[#allocation8 + $0x30] sm:$0xf] %v697
    %730 = vst [vmem:[#allocation8 + $0x34] sm:$0xf] %v698
    %731 = vst [vmem:[#allocation8 + $0x38] sm:$0xf] %v699
    %732 = vst [vmem:[#allocation8 + $0x3c] sm:$0xf] %v700
    // Predicated region
    $region30: #{tpu_custom_call.1} parent=1 // pred_check
      _
    $region31: #{tpu_custom_call.1} parent=1 // pred_check_branch
      %734 = sbr.rel (0) target = $region33
    $region32: #{tpu_custom_call.1} parent=1 // pred_region
      %s736 = ssub.s32 1024, 1024
      %737 = vsyncadd [#allocation4], %s736
      %s738 = sshll.u32 [#allocation8], 4
      %s739 = int_to_ptr.vmem [resolvable:$true] %s738
      %744 = dma.vmem_to_hbm [thread:$0]  %s739, 1024, %s4, [#allocation4], 64, 64, 4
    $region33: #{tpu_custom_call.1} parent=1 // pred_fallthru
      _
    // Predicated region
    $region34: #{tpu_custom_call.1} parent=1 // pred_check
      _
    $region35: #{tpu_custom_call.1} parent=1 // pred_check_branch
      %746 = sbr.rel (0) target = $region37
    $region36: #{tpu_custom_call.1} parent=1 // pred_region
      %747 = dma.done [#allocation4], 1024
    $region37: #{tpu_custom_call.1} parent=1 // pred_fallthru
      _
    %748 = vsyncpa [#allocation3], 1
    %749 = vsyncpa [#allocation6], 1
    %750 = vsyncpa [#allocation4], 1

// kernel: tpu_custom_call.1
$region0: #{tpu_custom_call.1}
  #allocation0 [shape = 'u32[]', space=smem, size = 0x4, offset = 0x4, fixed_abs, tag = 'smem constant byte address 0x4 - core index']
  #allocation1 [shape = 'u32[144,128]{1,0:T(1,128)}', space=vmem, size = 0x12000, scoped, tag = 'internal scratch']
  %s0 = inlined_call_operand.hbm [shape: bf16[128,256], index: 0, kind: input, shape index: {}]
  %s1 = inlined_call_operand.hbm [shape: bf16[128,128], index: 1, kind: input, shape index: {}]
  %s2 = inlined_call_operand.hbm [shape: bf16[256,128], index: 2, kind: input, shape index: {}]
  %s3 = inlined_call_operand.vmem [shape: f32[3,128], index: 3, kind: input, shape index: {}]
  %s4 = inlined_call_operand.hbm [shape: bf16[128,128], index: 4, kind: output, shape index: {}]
  %s5 = sld [smem:[#allocation0]]
  $region38: #{tpu_custom_call.1} parent=0
    _
  %s7 = ssub.s32 1, %s5
  %s8 = scalar_select 0, %s7, %s5
  $region1: #{tpu_custom_call.1} parent=0
    #allocation2 [shape = 'u8[65536]{0}', space=vmem, size = 0x10000, scoped, tag = 'input window, operand 0, single buffered']
    #allocation3 [shape = 's32[1]{0}', space=sflag, size = 0x4, scoped, tag = 'scoped memory for tpu_custom_call.1']
    #allocation4 [shape = 's32[1]{0}', space=sflag, size = 0x4, scoped, tag = 'scoped memory for tpu_custom_call.1']
    #allocation5 [shape = 'u8[32768]{0}', space=vmem, size = 0x8000, scoped, tag = 'input window, operand 1, single buffered']
    #allocation6 [shape = 's32[1]{0}', space=sflag, size = 0x4, scoped, tag = 'scoped memory for tpu_custom_call.1']
    #allocation7 [shape = 'u8[65536]{0}', space=vmem, size = 0x10000, scoped, tag = 'input window, operand 2, single buffered']
    #allocation8 [shape = 'u8[32768]{0}', space=vmem, size = 0x8000, scoped, tag = 'output window, operand 0, single buffered']
    %9 = vsyncpa [#allocation3], 0
    %10 = vsyncpa [#allocation6], 0
    %11 = vsyncpa [#allocation4], 0
    // Predicated region
    $region2: #{tpu_custom_call.1} parent=1 // pred_check
      _
    $region3: #{tpu_custom_call.1} parent=1 // pred_check_branch
      %13 = sbr.rel (0) target = $region5
    $region4: #{tpu_custom_call.1} parent=1 // pred_region
      %s15 = ssub.s32 2048, 2048
      %16 = vsyncadd [#allocation3], %s15
      %s17 = sshll.u32 [#allocation2], 4
      %s18 = int_to_ptr.vmem [resolvable:$true] %s17
      %23 = dma.hbm_to_vmem [thread:$0]  %s0, 2048, %s18, [#allocation3], 128, 128, 8
    $region5: #{tpu_custom_call.1} parent=1 // pred_fallthru
      _
    // Predicated region
    $region6: #{tpu_custom_call.1} parent=1 // pred_check
      _
    $region7: #{tpu_custom_call.1} parent=1 // pred_check_branch
      %25 = sbr.rel (0) target = $region9
    $region8: #{tpu_custom_call.1} parent=1 // pred_region
      %s27 = ssub.s32 1024, 1024
      %28 = vsyncadd [#allocation6], %s27
      %s29 = sshll.u32 [#allocation5], 4
      %s30 = int_to_ptr.vmem [resolvable:$true] %s29
      %35 = dma.hbm_to_vmem [thread:$0]  %s1, 1024, %s30, [#allocation6], 64, 64, 4
    $region9: #{tpu_custom_call.1} parent=1 // pred_fallthru
      _
    // Predicated region
    $region10: #{tpu_custom_call.1} parent=1 // pred_check
      _
    $region11: #{tpu_custom_call.1} parent=1 // pred_check_branch
      %37 = sbr.rel (0) target = $region13
    $region12: #{tpu_custom_call.1} parent=1 // pred_region
      %s39 = ssub.s32 2048, 2048
      %40 = vsyncadd [#allocation6], %s39
      %s41 = sshll.u32 [#allocation7], 4
      %s42 = int_to_ptr.vmem [resolvable:$true] %s41
      %47 = dma.hbm_to_vmem [thread:$0]  %s2, 2048, %s42, [#allocation6], 64, 64, 4
    $region13: #{tpu_custom_call.1} parent=1 // pred_fallthru
      _
    // Predicated region
    $region14: #{tpu_custom_call.1} parent=1 // pred_check
      _
    $region15: #{tpu_custom_call.1} parent=1 // pred_check_branch
      %49 = sbr.rel (0) target = $region17
    $region16: #{tpu_custom_call.1} parent=1 // pred_region
      _
    $region17: #{tpu_custom_call.1} parent=1 // pred_fallthru
      _
    // Predicated region
    $region18: #{tpu_custom_call.1} parent=1 // pred_check
      _
    $region19: #{tpu_custom_call.1} parent=1 // pred_check_branch
      %51 = sbr.rel (0) target = $region21
    $region20: #{tpu_custom_call.1} parent=1 // pred_region
      %52 = dma.done [#allocation3], 2048
    $region21: #{tpu_custom_call.1} parent=1 // pred_fallthru
      _
    // Predicated region
    $region22: #{tpu_custom_call.1} parent=1 // pred_check
      _
    $region23: #{tpu_custom_call.1} parent=1 // pred_check_branch
      %54 = sbr.rel (0) target = $region25
    $region24: #{tpu_custom_call.1} parent=1 // pred_region
      %55 = dma.done [#allocation6], 1024
    $region25: #{tpu_custom_call.1} parent=1 // pred_fallthru
      _
    // Predicated region
    $region26: #{tpu_custom_call.1} parent=1 // pred_check
      _
    $region27: #{tpu_custom_call.1} parent=1 // pred_check_branch
      %57 = sbr.rel (0) target = $region29
    $region28: #{tpu_custom_call.1} parent=1 // pred_region
      %58 = dma.done [#allocation6], 2048
    $region29: #{tpu_custom_call.1} parent=1 // pred_fallthru
      _
    %v60 = vld [vmem:[#allocation2] sm:$0xff]
    %v61 = vld [vmem:[#allocation2 + $0x8] sm:$0xff]
    %v62 = vld [vmem:[#allocation2 + $0x10] sm:$0xff]
    %v63 = vld [vmem:[#allocation2 + $0x18] sm:$0xff]
    %v64 = vld [vmem:[#allocation2 + $0x20] sm:$0xff]
    %v65 = vld [vmem:[#allocation2 + $0x28] sm:$0xff]
    %v66 = vld [vmem:[#allocation2 + $0x30] sm:$0xff]
    %v67 = vld [vmem:[#allocation2 + $0x38] sm:$0xff]
    %v68 = vld [vmem:[#allocation2 + $0x40] sm:$0xff]
    %v69 = vld [vmem:[#allocation2 + $0x48] sm:$0xff]
    %v70 = vld [vmem:[#allocation2 + $0x50] sm:$0xff]
    %v71 = vld [vmem:[#allocation2 + $0x58] sm:$0xff]
    %v72 = vld [vmem:[#allocation2 + $0x60] sm:$0xff]
    %v73 = vld [vmem:[#allocation2 + $0x68] sm:$0xff]
    %v74 = vld [vmem:[#allocation2 + $0x70] sm:$0xff]
    %v75 = vld [vmem:[#allocation2 + $0x78] sm:$0xff]
    %v76 = vld [vmem:[#allocation7] sm:$0xf]
    %v77 = vld [vmem:[#allocation7 + $0x4] sm:$0xf]
    %v78 = vld [vmem:[#allocation7 + $0x8] sm:$0xf]
    %v79 = vld [vmem:[#allocation7 + $0xc] sm:$0xf]
    %v80 = vld [vmem:[#allocation7 + $0x10] sm:$0xf]
    %v81 = vld [vmem:[#allocation7 + $0x14] sm:$0xf]
    %v82 = vld [vmem:[#allocation7 + $0x18] sm:$0xf]
    %v83 = vld [vmem:[#allocation7 + $0x1c] sm:$0xf]
    %v84 = vld [vmem:[#allocation7 + $0x20] sm:$0xf]
    %v85 = vld [vmem:[#allocation7 + $0x24] sm:$0xf]
    %v86 = vld [vmem:[#allocation7 + $0x28] sm:$0xf]
    %v87 = vld [vmem:[#allocation7 + $0x2c] sm:$0xf]
    %v88 = vld [vmem:[#allocation7 + $0x30] sm:$0xf]
    %v89 = vld [vmem:[#allocation7 + $0x34] sm:$0xf]
    %v90 = vld [vmem:[#allocation7 + $0x38] sm:$0xf]
    %v91 = vld [vmem:[#allocation7 + $0x3c] sm:$0xf]
    %v92 = vld [vmem:[#allocation7 + $0x40] sm:$0xf]
    %v93 = vld [vmem:[#allocation7 + $0x44] sm:$0xf]
    %v94 = vld [vmem:[#allocation7 + $0x48] sm:$0xf]
    %v95 = vld [vmem:[#allocation7 + $0x4c] sm:$0xf]
    %v96 = vld [vmem:[#allocation7 + $0x50] sm:$0xf]
    %v97 = vld [vmem:[#allocation7 + $0x54] sm:$0xf]
    %v98 = vld [vmem:[#allocation7 + $0x58] sm:$0xf]
    %v99 = vld [vmem:[#allocation7 + $0x5c] sm:$0xf]
    %v100 = vld [vmem:[#allocation7 + $0x60] sm:$0xf]
    %v101 = vld [vmem:[#allocation7 + $0x64] sm:$0xf]
    %v102 = vld [vmem:[#allocation7 + $0x68] sm:$0xf]
    %v103 = vld [vmem:[#allocation7 + $0x6c] sm:$0xf]
    %v104 = vld [vmem:[#allocation7 + $0x70] sm:$0xf]
    %v105 = vld [vmem:[#allocation7 + $0x74] sm:$0xf]
    %v106 = vld [vmem:[#allocation7 + $0x78] sm:$0xf]
    %v107 = vld [vmem:[#allocation7 + $0x7c] sm:$0xf]
    %v108 = vld [vmem:[%s3] sm:$0x1]
    %v109 = vld [vmem:[%s3 + $0x1] sm:$0x1]
    %v110 = vld [vmem:[%s3 + $0x2] sm:$0x1]
    %v111 = vlaneseq
    %v112 = vshrl.u32 %v111, 7
    %v113 = vsub.s32 0, %v112
    %v114 = vrot.slane %v108, %v113
    %v131 = vunpack.c.l.b16 %v60
    %v132 = vunpack.c.h.b16 %v60
    %v133 = vunpack.c.l.b16 %v61
    %v134 = vunpack.c.h.b16 %v61
    %v135 = vunpack.c.l.b16 %v62
    %v136 = vunpack.c.h.b16 %v62
    %v137 = vunpack.c.l.b16 %v63
    %v138 = vunpack.c.h.b16 %v63
    %v139 = vunpack.c.l.b16 %v64
    %v140 = vunpack.c.h.b16 %v64
    %v141 = vunpack.c.l.b16 %v65
    %v142 = vunpack.c.h.b16 %v65
    %v143 = vunpack.c.l.b16 %v66
    %v144 = vunpack.c.h.b16 %v66
    %v145 = vunpack.c.l.b16 %v67
    %v146 = vunpack.c.h.b16 %v67
    %v147 = vunpack.c.l.b16 %v68
    %v148 = vunpack.c.h.b16 %v68
    %v149 = vunpack.c.l.b16 %v69
    %v150 = vunpack.c.h.b16 %v69
    %v151 = vunpack.c.l.b16 %v70
    %v152 = vunpack.c.h.b16 %v70
    %v153 = vunpack.c.l.b16 %v71
    %v154 = vunpack.c.h.b16 %v71
    %v155 = vunpack.c.l.b16 %v72
    %v156 = vunpack.c.h.b16 %v72
    %v157 = vunpack.c.l.b16 %v73
    %v158 = vunpack.c.h.b16 %v73
    %v159 = vunpack.c.l.b16 %v74
    %v160 = vunpack.c.h.b16 %v74
    %v161 = vunpack.c.l.b16 %v75
    %v162 = vunpack.c.h.b16 %v75
    %v163 = vpack.c.b16 %v133, %v131
    %v164 = vpack.c.b16 %v134, %v132
    %v165 = vpack.c.b16 %v137, %v135
    %v166 = vpack.c.b16 %v138, %v136
    %v167 = vpack.c.b16 %v141, %v139
    %v168 = vpack.c.b16 %v142, %v140
    %v169 = vpack.c.b16 %v145, %v143
    %v170 = vpack.c.b16 %v146, %v144
    %v171 = vpack.c.b16 %v149, %v147
    %v172 = vpack.c.b16 %v150, %v148
    %v173 = vpack.c.b16 %v153, %v151
    %v174 = vpack.c.b16 %v154, %v152
    %v175 = vpack.c.b16 %v157, %v155
    %v176 = vpack.c.b16 %v158, %v156
    %v177 = vpack.c.b16 %v161, %v159
    %v178 = vpack.c.b16 %v162, %v160
    %v227 = vunpack.c.l.b16 %v76
    %v228 = vunpack.c.l.b16 %v77
    %v229 = vunpack.c.l.b16 %v78
    %v230 = vunpack.c.l.b16 %v79
    %v231 = vunpack.c.l.b16 %v80
    %v232 = vunpack.c.l.b16 %v81
    %v233 = vunpack.c.l.b16 %v82
    %v234 = vunpack.c.l.b16 %v83
    %v235 = vunpack.c.l.b16 %v84
    %v236 = vunpack.c.l.b16 %v85
    %v237 = vunpack.c.l.b16 %v86
    %v238 = vunpack.c.l.b16 %v87
    %v239 = vunpack.c.l.b16 %v88
    %v240 = vunpack.c.l.b16 %v89
    %v241 = vunpack.c.l.b16 %v90
    %v242 = vunpack.c.l.b16 %v91
    %v243 = vunpack.c.l.b16 %v92
    %v244 = vunpack.c.l.b16 %v93
    %v245 = vunpack.c.l.b16 %v94
    %v246 = vunpack.c.l.b16 %v95
    %v247 = vunpack.c.l.b16 %v96
    %v248 = vunpack.c.l.b16 %v97
    %v249 = vunpack.c.l.b16 %v98
    %v250 = vunpack.c.l.b16 %v99
    %v251 = vunpack.c.l.b16 %v100
    %v252 = vunpack.c.l.b16 %v101
    %v253 = vunpack.c.l.b16 %v102
    %v254 = vunpack.c.l.b16 %v103
    %v255 = vunpack.c.l.b16 %v104
    %v256 = vunpack.c.l.b16 %v105
    %v257 = vunpack.c.l.b16 %v106
    %v258 = vunpack.c.l.b16 %v107
    %v259 = vpack.c.b16 %v228, %v227
    %v260 = vpack.c.b16 %v230, %v229
    %v261 = vpack.c.b16 %v232, %v231
    %v262 = vpack.c.b16 %v234, %v233
    %v263 = vpack.c.b16 %v236, %v235
    %v264 = vpack.c.b16 %v238, %v237
    %v265 = vpack.c.b16 %v240, %v239
    %v266 = vpack.c.b16 %v242, %v241
    %v267 = vpack.c.b16 %v244, %v243
    %v268 = vpack.c.b16 %v246, %v245
    %v269 = vpack.c.b16 %v248, %v247
    %v270 = vpack.c.b16 %v250, %v249
    %v271 = vpack.c.b16 %v252, %v251
    %v272 = vpack.c.b16 %v254, %v253
    %v273 = vpack.c.b16 %v256, %v255
    %v274 = vpack.c.b16 %v258, %v257
    %291 = vmatprep.subr.bf16.mxu0 0
    %292 = vmatpush1.bf16.msra.mxu0 %v266
    %293 = vmatprep.subr.bf16.mxu0 0
    %294 = vmatpush1.bf16.msra.mxu0 %v265
    %295 = vmatprep.subr.bf16.mxu0 0
    %296 = vmatpush1.bf16.msra.mxu0 %v264
    %297 = vmatprep.subr.bf16.mxu0 0
    %298 = vmatpush1.bf16.msra.mxu0 %v263
    %299 = vmatprep.subr.bf16.mxu0 0
    %300 = vmatpush1.bf16.msra.mxu0 %v262
    %301 = vmatprep.subr.bf16.mxu0 0
    %302 = vmatpush1.bf16.msra.mxu0 %v261
    %303 = vmatprep.subr.bf16.mxu0 0
    %304 = vmatpush1.bf16.msra.mxu0 %v260
    %305 = vmatprep.subr.bf16.mxu0 0
    %306 = vmatpush1.bf16.msra.mxu0 %v259
    %307 = vmatprep.subr.bf16.mxu0 0
    %308 = vmatpush2.bf16.msra.mxu0 %v274
    %309 = vmatprep.subr.bf16.mxu0 0
    %310 = vmatpush2.bf16.msra.mxu0 %v273
    %311 = vmatprep.subr.bf16.mxu0 0
    %312 = vmatpush2.bf16.msra.mxu0 %v272
    %313 = vmatprep.subr.bf16.mxu0 0
    %314 = vmatpush2.bf16.msra.mxu0 %v271
    %315 = vmatprep.subr.bf16.mxu0 0
    %316 = vmatpush2.bf16.msra.mxu0 %v270
    %317 = vmatprep.subr.bf16.mxu0 0
    %318 = vmatpush2.bf16.msra.mxu0 %v269
    %319 = vmatprep.subr.bf16.mxu0 0
    %320 = vmatpush2.bf16.msra.mxu0 %v268
    %321 = vmatprep.subr.bf16.mxu0 0
    %322 = vmatpush2.bf16.msra.mxu0 %v267
    %323 = vmatprep.mubr.bf16.mxu0 %v164
    %324 = vmatmul.mubr.bf16.gmra.mxu0 %v163
    %v325 = vpop.f32.mrf.mxu0
    %v326 = vadd.f32 %v114, %v325
    %v327 = vpop.f32.mrf.mxu0
    %v328 = vpop.f32.mrf.mxu0
    %v329 = vadd.f32 %v114, %v328
    %v330 = vpop.f32.mrf.mxu0
    %331 = vmatprep.mubr.bf16.mxu0 %v166
    %332 = vmatmul.mubr.bf16.gmra.mxu0 %v165
    %v333 = vpop.f32.mrf.mxu0
    %v334 = vadd.f32 %v114, %v333
    %v335 = vpop.f32.mrf.mxu0
    %v336 = vpop.f32.mrf.mxu0
    %v337 = vadd.f32 %v114, %v336
    %v338 = vpop.f32.mrf.mxu0
    %339 = vmatprep.mubr.bf16.mxu0 %v168
    %340 = vmatmul.mubr.bf16.gmra.mxu0 %v167
    %v341 = vpop.f32.mrf.mxu0
    %v342 = vadd.f32 %v114, %v341
    %v343 = vpop.f32.mrf.mxu0
    %v344 = vpop.f32.mrf.mxu0
    %v345 = vadd.f32 %v114, %v344
    %v346 = vpop.f32.mrf.mxu0
    %347 = vmatprep.mubr.bf16.mxu0 %v170
    %348 = vmatmul.mubr.bf16.gmra.mxu0 %v169
    %v349 = vpop.f32.mrf.mxu0
    %v350 = vadd.f32 %v114, %v349
    %v351 = vpop.f32.mrf.mxu0
    %v352 = vpop.f32.mrf.mxu0
    %v353 = vadd.f32 %v114, %v352
    %v354 = vpop.f32.mrf.mxu0
    %355 = vmatprep.mubr.bf16.mxu0 %v172
    %356 = vmatmul.mubr.bf16.gmra.mxu0 %v171
    %v357 = vpop.f32.mrf.mxu0
    %v358 = vadd.f32 %v114, %v357
    %v359 = vpop.f32.mrf.mxu0
    %v360 = vpop.f32.mrf.mxu0
    %v361 = vadd.f32 %v114, %v360
    %v362 = vpop.f32.mrf.mxu0
    %363 = vmatprep.mubr.bf16.mxu0 %v174
    %364 = vmatmul.mubr.bf16.gmra.mxu0 %v173
    %v365 = vpop.f32.mrf.mxu0
    %v366 = vadd.f32 %v114, %v365
    %v367 = vpop.f32.mrf.mxu0
    %v368 = vpop.f32.mrf.mxu0
    %v369 = vadd.f32 %v114, %v368
    %v370 = vpop.f32.mrf.mxu0
    %371 = vmatprep.mubr.bf16.mxu0 %v176
    %372 = vmatmul.mubr.bf16.gmra.mxu0 %v175
    %v373 = vpop.f32.mrf.mxu0
    %v374 = vadd.f32 %v114, %v373
    %v375 = vpop.f32.mrf.mxu0
    %v376 = vpop.f32.mrf.mxu0
    %v377 = vadd.f32 %v114, %v376
    %v378 = vpop.f32.mrf.mxu0
    %379 = vmatprep.mubr.bf16.mxu0 %v178
    %380 = vmatmul.mubr.bf16.gmra.mxu0 %v177
    %v381 = vpop.f32.mrf.mxu0
    %v382 = vadd.f32 %v114, %v381
    %v383 = vpop.f32.mrf.mxu0
    %v384 = vpop.f32.mrf.mxu0
    %v385 = vadd.f32 %v114, %v384
    %v386 = vpop.f32.mrf.mxu0
    %387 = vdwg.mxu0
    %v388 = vld [vmem:[#allocation5] sm:$0xf]
    %v389 = vld [vmem:[#allocation5 + $0x4] sm:$0xf]
    %v390 = vld [vmem:[#allocation5 + $0x8] sm:$0xf]
    %v391 = vld [vmem:[#allocation5 + $0xc] sm:$0xf]
    %v392 = vld [vmem:[#allocation5 + $0x10] sm:$0xf]
    %v393 = vld [vmem:[#allocation5 + $0x14] sm:$0xf]
    %v394 = vld [vmem:[#allocation5 + $0x18] sm:$0xf]
    %v395 = vld [vmem:[#allocation5 + $0x1c] sm:$0xf]
    %v396 = vld [vmem:[#allocation5 + $0x20] sm:$0xf]
    %v397 = vld [vmem:[#allocation5 + $0x24] sm:$0xf]
    %v398 = vld [vmem:[#allocation5 + $0x28] sm:$0xf]
    %v399 = vld [vmem:[#allocation5 + $0x2c] sm:$0xf]
    %v400 = vld [vmem:[#allocation5 + $0x30] sm:$0xf]
    %v401 = vld [vmem:[#allocation5 + $0x34] sm:$0xf]
    %v402 = vld [vmem:[#allocation5 + $0x38] sm:$0xf]
    %v403 = vld [vmem:[#allocation5 + $0x3c] sm:$0xf]
    %v404 = vunpack.c.l.bf16 %v388
    %v405 = vunpack.c.l.bf16 %v389
    %v406 = vunpack.c.l.bf16 %v390
    %v407 = vunpack.c.l.bf16 %v391
    %v408 = vunpack.c.l.bf16 %v392
    %v409 = vunpack.c.l.bf16 %v393
    %v410 = vunpack.c.l.bf16 %v394
    %v411 = vunpack.c.l.bf16 %v395
    %v412 = vunpack.c.l.bf16 %v396
    %v413 = vunpack.c.l.bf16 %v397
    %v414 = vunpack.c.l.bf16 %v398
    %v415 = vunpack.c.l.bf16 %v399
    %v416 = vunpack.c.l.bf16 %v400
    %v417 = vunpack.c.l.bf16 %v401
    %v418 = vunpack.c.l.bf16 %v402
    %v419 = vunpack.c.l.bf16 %v403
    %v420 = vadd.f32 %v326, %v404
    %v421 = vadd.f32 %v329, %v405
    %v422 = vadd.f32 %v334, %v406
    %v423 = vadd.f32 %v337, %v407
    %v424 = vadd.f32 %v342, %v408
    %v425 = vadd.f32 %v345, %v409
    %v426 = vadd.f32 %v350, %v410
    %v427 = vadd.f32 %v353, %v411
    %v428 = vadd.f32 %v358, %v412
    %v429 = vadd.f32 %v361, %v413
    %v430 = vadd.f32 %v366, %v414
    %v431 = vadd.f32 %v369, %v415
    %v432 = vadd.f32 %v374, %v416
    %v433 = vadd.f32 %v377, %v417
    %v434 = vadd.f32 %v382, %v418
    %v435 = vadd.f32 %v385, %v419
    %436 = vadd.xlane.f32.xlu0 %v420
    %v437 = vpop.xlane.xlu0 %436
    %438 = vadd.xlane.f32.xlu0 %v421
    %v439 = vpop.xlane.xlu0 %438
    %440 = vadd.xlane.f32.xlu0 %v422
    %v441 = vpop.xlane.xlu0 %440
    %442 = vadd.xlane.f32.xlu0 %v423
    %v443 = vpop.xlane.xlu0 %442
    %444 = vadd.xlane.f32.xlu0 %v424
    %v445 = vpop.xlane.xlu0 %444
    %446 = vadd.xlane.f32.xlu0 %v425
    %v447 = vpop.xlane.xlu0 %446
    %448 = vadd.xlane.f32.xlu0 %v426
    %v449 = vpop.xlane.xlu0 %448
    %450 = vadd.xlane.f32.xlu0 %v427
    %v451 = vpop.xlane.xlu0 %450
    %452 = vadd.xlane.f32.xlu0 %v428
    %v453 = vpop.xlane.xlu0 %452
    %454 = vadd.xlane.f32.xlu0 %v429
    %v455 = vpop.xlane.xlu0 %454
    %456 = vadd.xlane.f32.xlu0 %v430
    %v457 = vpop.xlane.xlu0 %456
    %458 = vadd.xlane.f32.xlu0 %v431
    %v459 = vpop.xlane.xlu0 %458
    %460 = vadd.xlane.f32.xlu0 %v432
    %v461 = vpop.xlane.xlu0 %460
    %462 = vadd.xlane.f32.xlu0 %v433
    %v463 = vpop.xlane.xlu0 %462
    %464 = vadd.xlane.f32.xlu0 %v434
    %v465 = vpop.xlane.xlu0 %464
    %466 = vadd.xlane.f32.xlu0 %v435
    %v467 = vpop.xlane.xlu0 %466
    %v468 = vrcp.pop 128.0
    %v469 = vmul.f32 %v437, %v468
    %v470 = vmul.f32 %v439, %v468
    %v471 = vmul.f32 %v441, %v468
    %v472 = vmul.f32 %v443, %v468
    %v473 = vmul.f32 %v445, %v468
    %v474 = vmul.f32 %v447, %v468
    %v475 = vmul.f32 %v449, %v468
    %v476 = vmul.f32 %v451, %v468
    %v477 = vmul.f32 %v453, %v468
    %v478 = vmul.f32 %v455, %v468
    %v479 = vmul.f32 %v457, %v468
    %v480 = vmul.f32 %v459, %v468
    %v481 = vmul.f32 %v461, %v468
    %v482 = vmul.f32 %v463, %v468
    %v483 = vmul.f32 %v465, %v468
    %v484 = vmul.f32 %v467, %v468
    %v485 = vsub.f32 %v420, %v469
    %v486 = vsub.f32 %v421, %v470
    %v487 = vsub.f32 %v422, %v471
    %v488 = vsub.f32 %v423, %v472
    %v489 = vsub.f32 %v424, %v473
    %v490 = vsub.f32 %v425, %v474
    %v491 = vsub.f32 %v426, %v475
    %v492 = vsub.f32 %v427, %v476
    %v493 = vsub.f32 %v428, %v477
    %v494 = vsub.f32 %v429, %v478
    %v495 = vsub.f32 %v430, %v479
    %v496 = vsub.f32 %v431, %v480
    %v497 = vsub.f32 %v432, %v481
    %v498 = vsub.f32 %v433, %v482
    %v499 = vsub.f32 %v434, %v483
    %v500 = vsub.f32 %v435, %v484
    %v501 = vmul.f32 %v485, %v485
    %v502 = vmul.f32 %v486, %v486
    %v503 = vmul.f32 %v487, %v487
    %v504 = vmul.f32 %v488, %v488
    %v505 = vmul.f32 %v489, %v489
    %v506 = vmul.f32 %v490, %v490
    %v507 = vmul.f32 %v491, %v491
    %v508 = vmul.f32 %v492, %v492
    %v509 = vmul.f32 %v493, %v493
    %v510 = vmul.f32 %v494, %v494
    %v511 = vmul.f32 %v495, %v495
    %v512 = vmul.f32 %v496, %v496
    %v513 = vmul.f32 %v497, %v497
    %v514 = vmul.f32 %v498, %v498
    %v515 = vmul.f32 %v499, %v499
    %v516 = vmul.f32 %v500, %v500
    %517 = vadd.xlane.f32.xlu0 %v501
    %v518 = vpop.xlane.xlu0 %517
    %519 = vadd.xlane.f32.xlu0 %v502
    %v520 = vpop.xlane.xlu0 %519
    %521 = vadd.xlane.f32.xlu0 %v503
    %v522 = vpop.xlane.xlu0 %521
    %523 = vadd.xlane.f32.xlu0 %v504
    %v524 = vpop.xlane.xlu0 %523
    %525 = vadd.xlane.f32.xlu0 %v505
    %v526 = vpop.xlane.xlu0 %525
    %527 = vadd.xlane.f32.xlu0 %v506
    %v528 = vpop.xlane.xlu0 %527
    %529 = vadd.xlane.f32.xlu0 %v507
    %v530 = vpop.xlane.xlu0 %529
    %531 = vadd.xlane.f32.xlu0 %v508
    %v532 = vpop.xlane.xlu0 %531
    %533 = vadd.xlane.f32.xlu0 %v509
    %v534 = vpop.xlane.xlu0 %533
    %535 = vadd.xlane.f32.xlu0 %v510
    %v536 = vpop.xlane.xlu0 %535
    %537 = vadd.xlane.f32.xlu0 %v511
    %v538 = vpop.xlane.xlu0 %537
    %539 = vadd.xlane.f32.xlu0 %v512
    %v540 = vpop.xlane.xlu0 %539
    %541 = vadd.xlane.f32.xlu0 %v513
    %v542 = vpop.xlane.xlu0 %541
    %543 = vadd.xlane.f32.xlu0 %v514
    %v544 = vpop.xlane.xlu0 %543
    %545 = vadd.xlane.f32.xlu0 %v515
    %v546 = vpop.xlane.xlu0 %545
    %547 = vadd.xlane.f32.xlu0 %v516
    %v548 = vpop.xlane.xlu0 %547
    %v549 = vmul.f32 %v518, %v468
    %v550 = vmul.f32 %v520, %v468
    %v551 = vmul.f32 %v522, %v468
    %v552 = vmul.f32 %v524, %v468
    %v553 = vmul.f32 %v526, %v468
    %v554 = vmul.f32 %v528, %v468
    %v555 = vmul.f32 %v530, %v468
    %v556 = vmul.f32 %v532, %v468
    %v557 = vmul.f32 %v534, %v468
    %v558 = vmul.f32 %v536, %v468
    %v559 = vmul.f32 %v538, %v468
    %v560 = vmul.f32 %v540, %v468
    %v561 = vmul.f32 %v542, %v468
    %v562 = vmul.f32 %v544, %v468
    %v563 = vmul.f32 %v546, %v468
    %v564 = vmul.f32 %v548, %v468
    %v565 = vadd.f32 %v549, 1e-12
    %v566 = vadd.f32 %v550, 1e-12
    %v567 = vadd.f32 %v551, 1e-12
    %v568 = vadd.f32 %v552, 1e-12
    %v569 = vadd.f32 %v553, 1e-12
    %v570 = vadd.f32 %v554, 1e-12
    %v571 = vadd.f32 %v555, 1e-12
    %v572 = vadd.f32 %v556, 1e-12
    %v573 = vadd.f32 %v557, 1e-12
    %v574 = vadd.f32 %v558, 1e-12
    %v575 = vadd.f32 %v559, 1e-12
    %v576 = vadd.f32 %v560, 1e-12
    %v577 = vadd.f32 %v561, 1e-12
    %v578 = vadd.f32 %v562, 1e-12
    %v579 = vadd.f32 %v563, 1e-12
    %v580 = vadd.f32 %v564, 1e-12
    %v581 = vrsqrt.pop %v565
    %v582 = vrsqrt.pop %v566
    %v583 = vrsqrt.pop %v567
    %v584 = vrsqrt.pop %v568
    %v585 = vrsqrt.pop %v569
    %v586 = vrsqrt.pop %v570
    %v587 = vrsqrt.pop %v571
    %v588 = vrsqrt.pop %v572
    %v589 = vrsqrt.pop %v573
    %v590 = vrsqrt.pop %v574
    %v591 = vrsqrt.pop %v575
    %v592 = vrsqrt.pop %v576
    %v593 = vrsqrt.pop %v577
    %v594 = vrsqrt.pop %v578
    %v595 = vrsqrt.pop %v579
    %v596 = vrsqrt.pop %v580
    %v597 = vmul.f32 %v485, %v581
    %v598 = vmul.f32 %v486, %v582
    %v599 = vmul.f32 %v487, %v583
    %v600 = vmul.f32 %v488, %v584
    %v601 = vmul.f32 %v489, %v585
    %v602 = vmul.f32 %v490, %v586
    %v603 = vmul.f32 %v491, %v587
    %v604 = vmul.f32 %v492, %v588
    %v605 = vmul.f32 %v493, %v589
    %v606 = vmul.f32 %v494, %v590
    %v607 = vmul.f32 %v495, %v591
    %v608 = vmul.f32 %v496, %v592
    %v609 = vmul.f32 %v497, %v593
    %v610 = vmul.f32 %v498, %v594
    %v611 = vmul.f32 %v499, %v595
    %v612 = vmul.f32 %v500, %v596
    %v613 = vlaneseq
    %v614 = vshrl.u32 %v613, 7
    %v615 = vsub.s32 0, %v614
    %v616 = vrot.slane %v109, %v615
    %v617 = vmul.f32 %v597, %v616
    %v618 = vmul.f32 %v598, %v616
    %v619 = vmul.f32 %v599, %v616
    %v620 = vmul.f32 %v600, %v616
    %v621 = vmul.f32 %v601, %v616
    %v622 = vmul.f32 %v602, %v616
    %v623 = vmul.f32 %v603, %v616
    %v624 = vmul.f32 %v604, %v616
    %v625 = vmul.f32 %v605, %v616
    %v626 = vmul.f32 %v606, %v616
    %v627 = vmul.f32 %v607, %v616
    %v628 = vmul.f32 %v608, %v616
    %v629 = vmul.f32 %v609, %v616
    %v630 = vmul.f32 %v610, %v616
    %v631 = vmul.f32 %v611, %v616
    %v632 = vmul.f32 %v612, %v616
    %v633 = vlaneseq
    %v634 = vshrl.u32 %v633, 7
    %v635 = vsub.s32 0, %v634
    %v636 = vrot.slane %v110, %v635
    %v637 = vadd.f32 %v617, %v636
    %v638 = vadd.f32 %v618, %v636
    %v639 = vadd.f32 %v619, %v636
    %v640 = vadd.f32 %v620, %v636
    %v641 = vadd.f32 %v621, %v636
    %v642 = vadd.f32 %v622, %v636
    %v643 = vadd.f32 %v623, %v636
    %v644 = vadd.f32 %v624, %v636
    %v645 = vadd.f32 %v625, %v636
    %v646 = vadd.f32 %v626, %v636
    %v647 = vadd.f32 %v627, %v636
    %v648 = vadd.f32 %v628, %v636
    %v649 = vadd.f32 %v629, %v636
    %v650 = vadd.f32 %v630, %v636
    %v651 = vadd.f32 %v631, %v636
    %v652 = vadd.f32 %v632, %v636
    %v653 = vpack.c.bf16 %v638, %v637
    %v654 = vpack.c.bf16 %v640, %v639
    %v655 = vpack.c.bf16 %v642, %v641
    %v656 = vpack.c.bf16 %v644, %v643
    %v657 = vpack.c.bf16 %v646, %v645
    %v658 = vpack.c.bf16 %v648, %v647
    %v659 = vpack.c.bf16 %v650, %v649
    %v660 = vpack.c.bf16 %v652, %v651
    %v669 = vunpack.c.l.b16 %v653
    %v670 = vunpack.c.h.b16 %v653
    %v671 = vunpack.c.l.b16 %v654
    %v672 = vunpack.c.h.b16 %v654
    %v673 = vunpack.c.l.b16 %v655
    %v674 = vunpack.c.h.b16 %v655
    %v675 = vunpack.c.l.b16 %v656
    %v676 = vunpack.c.h.b16 %v656
    %v677 = vunpack.c.l.b16 %v657
    %v678 = vunpack.c.h.b16 %v657
    %v679 = vunpack.c.l.b16 %v658
    %v680 = vunpack.c.h.b16 %v658
    %v681 = vunpack.c.l.b16 %v659
    %v682 = vunpack.c.h.b16 %v659
    %v683 = vunpack.c.l.b16 %v660
    %v684 = vunpack.c.h.b16 %v660
    %v685 = vpack.c.b16 %v669, %v669
    %v686 = vpack.c.b16 %v670, %v670
    %v687 = vpack.c.b16 %v671, %v671
    %v688 = vpack.c.b16 %v672, %v672
    %v689 = vpack.c.b16 %v673, %v673
    %v690 = vpack.c.b16 %v674, %v674
    %v691 = vpack.c.b16 %v675, %v675
    %v692 = vpack.c.b16 %v676, %v676
    %v693 = vpack.c.b16 %v677, %v677
    %v694 = vpack.c.b16 %v678, %v678
    %v695 = vpack.c.b16 %v679, %v679
    %v696 = vpack.c.b16 %v680, %v680
    %v697 = vpack.c.b16 %v681, %v681
    %v698 = vpack.c.b16 %v682, %v682
    %v699 = vpack.c.b16 %v683, %v683
    %v700 = vpack.c.b16 %v684, %v684
    %717 = vst [vmem:[#allocation8] sm:$0xf] %v685
    %718 = vst [vmem:[#allocation8 + $0x4] sm:$0xf] %v686
    %719 = vst [vmem:[#allocation8 + $0x8] sm:$0xf] %v687
    %720 = vst [vmem:[#allocation8 + $0xc] sm:$0xf] %v688
    %721 = vst [vmem:[#allocation8 + $0x10] sm:$0xf] %v689
    %722 = vst [vmem:[#allocation8 + $0x14] sm:$0xf] %v690
    %723 = vst [vmem:[#allocation8 + $0x18] sm:$0xf] %v691
    %724 = vst [vmem:[#allocation8 + $0x1c] sm:$0xf] %v692
    %725 = vst [vmem:[#allocation8 + $0x20] sm:$0xf] %v693
    %726 = vst [vmem:[#allocation8 + $0x24] sm:$0xf] %v694
    %727 = vst [vmem:[#allocation8 + $0x28] sm:$0xf] %v695
    %728 = vst [vmem:[#allocation8 + $0x2c] sm:$0xf] %v696
    %729 = vst [vmem:[#allocation8 + $0x30] sm:$0xf] %v697
    %730 = vst [vmem:[#allocation8 + $0x34] sm:$0xf] %v698
    %731 = vst [vmem:[#allocation8 + $0x38] sm:$0xf] %v699
    %732 = vst [vmem:[#allocation8 + $0x3c] sm:$0xf] %v700
    // Predicated region
    $region30: #{tpu_custom_call.1} parent=1 // pred_check
      _
    $region31: #{tpu_custom_call.1} parent=1 // pred_check_branch
      %734 = sbr.rel (0) target = $region33
    $region32: #{tpu_custom_call.1} parent=1 // pred_region
      %s736 = ssub.s32 1024, 1024
      %737 = vsyncadd [#allocation4], %s736
      %s738 = sshll.u32 [#allocation8], 4
      %s739 = int_to_ptr.vmem [resolvable:$true] %s738
      %744 = dma.vmem_to_hbm [thread:$0]  %s739, 1024, %s4, [#allocation4], 64, 64, 4
    $region33: #{tpu_custom_call.1} parent=1 // pred_fallthru
      _
    // Predicated region
    $region34: #{tpu_custom_call.1} parent=1 // pred_check
      _
    $region35: #{tpu_custom_call.1} parent=1 // pred_check_branch
      %746 = sbr.rel (0) target = $region37
    $region36: #{tpu_custom_call.1} parent=1 // pred_region
      %747 = dma.done [#allocation4], 1024
    $region37: #{tpu_custom_call.1} parent=1 // pred_fallthru
      _
    %748 = vsyncpa [#allocation3], 1
    %749 = vsyncpa [#allocation6], 1
    %750 = vsyncpa [#allocation4], 1

</llo_original>
